<compile_context>
chip_gen: v6e
topology: v6e:2x2x1
jax: 0.10.0
libtpu: 0.0.40
codegen_flags: <defaults>
</compile_context>

<pallas_src>
import functools

import jax
import jax.numpy as jnp
from jax import lax
from jax.experimental import pallas as pl
from jax.experimental.pallas import tpu as pltpu

EPS = 1e-5          # BatchNorm2d / SubSpectralNorm default eps
S_SUBBANDS = 5      # SubSpectralNorm S ("sub")


def broadcasted_block_kernel(x_ref, wf_ref, ssg_ref, ssb_ref, wt_ref,
                             bng_ref, bnb_ref, w2_ref, o_ref, *, T, sub):
    x3 = x_ref[...]                              # (N, C, L), L = F*T, lane-dense
    N, C, L = x3.shape
    F = L // T
    band = F // sub
    NC = N * C
    f32 = jnp.float32
    contract_last = (((1,), (1,)), ((), ()))     # dot_general: A @ B.T

    x2 = x3.reshape(NC, L)

    # ---- freq_dw_conv: depthwise (3,1), pad (1,0) ----------------------------
    # Neighbour frequencies live +/-T lanes away in the flattened layout.
    # (1, L) boundary mask + serial accumulation keeps vreg pressure low.
    lane = lax.broadcasted_iota(jnp.int32, (1, L), 1)
    wf = wf_ref[...]                             # (C, 3)
    out3 = wf[None, :, 1:2] * x3
    up = jnp.where(lane >= T, pltpu.roll(x2, T, axis=1), 0.0)        # in[f-1, t]
    out3 = out3 + wf[None, :, 0:1] * up.reshape(N, C, L)
    dn = jnp.where(lane < L - T, pltpu.roll(x2, L - T, axis=1), 0.0) # in[f+1, t]
    out3 = out3 + wf[None, :, 2:3] * dn.reshape(N, C, L)             # (N, C, L)

    # ---- SubSpectralNorm: train-mode BN per (channel, sub-band) --------------
    # Band indicator (S, L) built in-kernel (no DMA).  Per-(c,s) sums and
    # sum-of-squares via ONE MXU matmul on a (2C, L) slab; scale/shift
    # broadcast back with ONE matmul on a (2C, S) slab.  Single-pass
    # E[x^2]-E[x]^2, clamped >= 0 against roundoff.
    bandT = band * T
    l_i = lax.broadcasted_iota(jnp.int32, (sub, L), 1)
    lo = lax.broadcasted_iota(jnp.int32, (sub, L), 0) * bandT
    bbc = ((l_i >= lo) & (l_i < lo + bandT)).astype(f32)             # (S, L)

    s_cl = jnp.sum(out3, axis=0)                                     # (C, L)
    sq_cl = jnp.sum(out3 * out3, axis=0)                             # (C, L)
    stats_in = jnp.concatenate([s_cl, sq_cl], axis=0)                # (2C, L)
    cnt = float(N * bandT)                                           # N*band*T
    stats = lax.dot_general(stats_in, bbc, contract_last,
                            preferred_element_type=f32) * (1.0 / cnt)  # (2C, S)
    mu, ex2 = stats[:C], stats[C:]
    var = jnp.maximum(ex2 - mu * mu, 0.0)
    scale_cs = ssg_ref[...] * lax.rsqrt(var + EPS)                   # (C, S)
    shift_cs = ssb_ref[...] - mu * scale_cs
    ss = jnp.concatenate([scale_cs, shift_cs], axis=0)               # (2C, S)
    ss_cl = jnp.dot(ss, bbc, preferred_element_type=f32)             # (2C, L)
    aux3 = out3 * ss_cl[None, :C] + ss_cl[None, C:]                  # auxilary

    # ---- mean over frequency (keepdim) ---------------------------------------
    # Time-slot indicator (T, L) built in-kernel; strided (stride T) lane
    # reduction as one MXU matmul; 1/F applied afterwards as a scalar so the
    # 0/1 indicator stays exact.
    l_t = lax.broadcasted_iota(jnp.int32, (T, L), 1)
    l_mod = (l_t & (T - 1)) if (T & (T - 1)) == 0 else lax.rem(l_t, T)
    t_i = lax.broadcasted_iota(jnp.int32, (T, L), 0)
    pbc = (l_mod == t_i).astype(f32)                                 # (T, L)

    m2 = lax.dot_general(aux3.reshape(NC, L), pbc, contract_last,
                         preferred_element_type=f32) * (1.0 / F)     # (NC, T)

    # ---- temp_dw_conv: depthwise (1,3), pad (0,1) ----------------------------
    lt = lax.broadcasted_iota(jnp.int32, (1, T), 1)
    wt = wt_ref[...]                                                 # (C, 3)
    m3 = m2.reshape(N, C, T)
    z3 = wt[None, :, 1:2] * m3
    ml = jnp.where(lt >= 1, pltpu.roll(m2, 1, axis=1), 0.0)          # in[t-1]
    z3 = z3 + wt[None, :, 0:1] * ml.reshape(N, C, T)
    mr = jnp.where(lt < T - 1, pltpu.roll(m2, T - 1, axis=1), 0.0)   # in[t+1]
    z3 = z3 + wt[None, :, 2:3] * mr.reshape(N, C, T)                 # (N, C, T)

    # ---- bn (train-mode BatchNorm2d over (N, 1, T)) + ReLU ("swish"=ReLU) ----
    cnt2 = float(N * T)
    s_c = jnp.sum(jnp.sum(z3, axis=2, keepdims=True), axis=0) / cnt2       # (C,1)
    e2_c = jnp.sum(jnp.sum(z3 * z3, axis=2, keepdims=True), axis=0) / cnt2
    var2 = jnp.maximum(e2_c - s_c * s_c, 0.0)
    scale_c = bng_ref[...] * lax.rsqrt(var2 + EPS)                   # (C, 1)
    shift_c = bnb_ref[...] - s_c * scale_c
    z3 = jnp.maximum(z3 * scale_c[None] + shift_c[None], 0.0)

    # ---- conv1x1 (N tiny static matmuls) -> ONE broadcast-over-F matmul,
    #      ONE residual add + ReLU, ONE bulk lane-dense store -------------------
    w2 = w2_ref[...]                                                 # (C, C)
    y2 = jnp.concatenate(
        [jnp.dot(w2, z3[n], preferred_element_type=f32) for n in range(N)],
        axis=0)                                                      # (NC, T)
    yb = jnp.dot(y2, pbc, preferred_element_type=f32)                # (NC, L)
    res = jnp.maximum(x2 + aux3.reshape(NC, L) + yb, 0.0)
    o_ref[...] = res.reshape(N, C, L).astype(o_ref.dtype)


def broadcasted_block(x, params, sub=S_SUBBANDS):
    """Forward pass of myBroadcastedBlock. x: (N, C, F, T), F % sub == 0."""
    N, C, F, T = x.shape
    assert F % sub == 0, f"F={F} must be divisible by sub={sub}"
    L = F * T

    # Flatten (F, T) -> lane-dense L (free: trailing contiguous dims collapse).
    x2 = x.reshape(N, C, L)

    kernel = functools.partial(broadcasted_block_kernel, T=T, sub=sub)
    vmem = pl.BlockSpec(memory_space=pltpu.MemorySpace.VMEM)
    args = (x2,
            params["wf"],
            params["ssn_g"], params["ssn_b"],
            params["wt"],
            params["bn_g"], params["bn_b"],
            params["w2"])

    # Advisory cost estimate so XLA can schedule around the tiny custom call.
    flops = int(
        6 * N * C * L                 # freq depthwise conv
        + 4 * N * C * L               # SSN batch sums (x, x^2)
        + 2 * (2 * C) * L * sub       # SSN stats matmul
        + 2 * (2 * C) * sub * L       # SSN scale/shift broadcast matmul
        + 2 * N * C * L               # SSN apply
        + 2 * N * C * L * T           # mean-over-F matmul
        + 6 * N * C * T               # temporal depthwise conv
        + 8 * N * C * T               # bn stats + apply + relu
        + 2 * N * C * C * T           # conv1x1
        + 2 * N * C * T * L           # broadcast-over-F matmul
        + 3 * N * C * L)              # residual add + final relu
    param_elems = C * (3 + 3 + 2 * sub + 2 + C)
    cost = pl.CostEstimate(flops=flops,
                           transcendentals=int(C * (sub + 1)),
                           bytes_accessed=int(4 * (2 * N * C * L + param_elems)))

    out2 = pl.pallas_call(
        kernel,
        out_shape=jax.ShapeDtypeStruct((N, C, L), x.dtype),
        in_specs=[vmem] * len(args),
        out_specs=vmem,
        compiler_params=pltpu.CompilerParams(vmem_limit_bytes=32 * 1024 * 1024),
        cost_estimate=cost,
    )(*args)
    return out2.reshape(N, C, F, T)


def init_params(key, planes, sub):
    """Deterministic synthetic parameters (PyTorch shapes squeezed):
      freq_dw_conv : (planes, 1, 3, 1) -> (planes, 3)
      ssn1.bn      : (planes*sub,)     -> (planes, sub)   [channel = c*sub + s]
      temp_dw_conv : (planes, 1, 1, 3) -> (planes, 3)
      bn           : (planes,)         -> (planes, 1)
      conv1x1      : (planes, planes, 1, 1) -> (planes, planes)
    """
    ks = jax.random.split(key, 7)
    f32 = jnp.float32
    return {
        "wf":    0.3 * jax.random.normal(ks[0], (planes, 3), f32),
        "ssn_g": 1.0 + 0.1 * jax.random.normal(ks[1], (planes, sub), f32),
        "ssn_b": 0.1 * jax.random.normal(ks[2], (planes, sub), f32),
        "wt":    0.3 * jax.random.normal(ks[3], (planes, 3), f32),
        "bn_g":  1.0 + 0.1 * jax.random.normal(ks[4], (planes, 1), f32),
        "bn_b":  0.1 * jax.random.normal(ks[5], (planes, 1), f32),
        "w2":    0.3 * jax.random.normal(ks[6], (planes, planes), f32),
    }


if __name__ == "__main__":
    key = jax.random.PRNGKey(0)
    kx, kp = jax.random.split(key)

    # Small shapes consistent with the module: F divisible by sub=5;
    # F*T = 640 is a multiple of 128 -> fully lane-dense vregs and stores.
    N, planes, sub, F, T = 2, 8, S_SUBBANDS, 20, 32
    x = jax.random.normal(kx, (N, planes, F, T), jnp.float32)
    params = init_params(kp, planes, sub)

    out = jax.jit(broadcasted_block)(x, params)
    out = jax.block_until_ready(out)

    assert out.shape == (N, planes, F, T), out.shape
    assert bool(jnp.all(jnp.isfinite(out)))
    assert bool(jnp.all(out >= 0.0))          # final op is ReLU
    print("KERNEL_OK")
</pallas_src>

<mosaic_0001>
module attributes {stable_mosaic.version = 11 : i64} {
  func.func @broadcasted_block_kernel(%arg0: memref<2x8x640xf32, #tpu.memory_space<vmem>>, %arg1: memref<8x3xf32, #tpu.memory_space<vmem>>, %arg2: memref<8x5xf32, #tpu.memory_space<vmem>>, %arg3: memref<8x5xf32, #tpu.memory_space<vmem>>, %arg4: memref<8x3xf32, #tpu.memory_space<vmem>>, %arg5: memref<8x1xf32, #tpu.memory_space<vmem>>, %arg6: memref<8x1xf32, #tpu.memory_space<vmem>>, %arg7: memref<8x8xf32, #tpu.memory_space<vmem>>, %arg8: memref<2x8x640xf32, #tpu.memory_space<vmem>>) attributes {dimension_semantics = [], scalar_prefetch = 0 : i64, scratch_operands = 0 : i64, tpu.core_type = #tpu.core_type<tc>} {
    %c0 = arith.constant 0 : index
    %c0_0 = arith.constant 0 : index
    %c0_1 = arith.constant 0 : index
    %0 = vector.load %arg0[%c0, %c0_0, %c0_1] : memref<2x8x640xf32, #tpu.memory_space<vmem>>, vector<2x8x640xf32>
    %1 = vector.shape_cast %0 : vector<2x8x640xf32> to vector<16x640xf32>
    %2 = tpu.iota {dimensions = array<i32: 1>} : vector<1x640xi32>
    %c0_2 = arith.constant 0 : index
    %c0_3 = arith.constant 0 : index
    %3 = vector.load %arg1[%c0_2, %c0_3] : memref<8x3xf32, #tpu.memory_space<vmem>>, vector<8x3xf32>
    %4 = vector.extract_strided_slice %3 {offsets = [0, 1], sizes = [8, 1], strides = [1, 1]} : vector<8x3xf32> to vector<8x1xf32>
    %5 = vector.shape_cast %4 : vector<8x1xf32> to vector<1x8x1xf32>
    %6 = vector.broadcast %5 : vector<1x8x1xf32> to vector<2x8x640xf32>
    %7 = arith.mulf %6, %0 : vector<2x8x640xf32>
    %c32_i32 = arith.constant 32 : i32
    %8 = vector.broadcast %c32_i32 : i32 to vector<1x640xi32>
    %9 = arith.cmpi sge, %2, %8 : vector<1x640xi32>
    %c32_i32_4 = arith.constant 32 : i32
    %10 = tpu.dynamic_rotate %1 by %c32_i32_4 dim 1 : vector<16x640xf32>, i32 -> vector<16x640xf32>
    %cst = arith.constant 0.000000e+00 : f32
    %11 = vector.shape_cast %9 : vector<1x640xi1> to vector<1x640xi1>
    %12 = vector.broadcast %11 : vector<1x640xi1> to vector<16x640xi1>
    %13 = vector.broadcast %cst : f32 to vector<16x640xf32>
    %14 = arith.select %12, %10, %13 : vector<16x640xi1>, vector<16x640xf32>
    %15 = vector.extract_strided_slice %3 {offsets = [0, 0], sizes = [8, 1], strides = [1, 1]} : vector<8x3xf32> to vector<8x1xf32>
    %16 = vector.shape_cast %15 : vector<8x1xf32> to vector<1x8x1xf32>
    %17 = vector.shape_cast %14 : vector<16x640xf32> to vector<2x8x640xf32>
    %18 = vector.broadcast %16 : vector<1x8x1xf32> to vector<2x8x640xf32>
    %19 = arith.mulf %18, %17 : vector<2x8x640xf32>
    %20 = arith.addf %7, %19 : vector<2x8x640xf32>
    %c608_i32 = arith.constant 608 : i32
    %21 = vector.broadcast %c608_i32 : i32 to vector<1x640xi32>
    %22 = arith.cmpi slt, %2, %21 : vector<1x640xi32>
    %c608_i32_5 = arith.constant 608 : i32
    %23 = tpu.dynamic_rotate %1 by %c608_i32_5 dim 1 : vector<16x640xf32>, i32 -> vector<16x640xf32>
    %cst_6 = arith.constant 0.000000e+00 : f32
    %24 = vector.shape_cast %22 : vector<1x640xi1> to vector<1x640xi1>
    %25 = vector.broadcast %24 : vector<1x640xi1> to vector<16x640xi1>
    %26 = vector.broadcast %cst_6 : f32 to vector<16x640xf32>
    %27 = arith.select %25, %23, %26 : vector<16x640xi1>, vector<16x640xf32>
    %28 = vector.extract_strided_slice %3 {offsets = [0, 2], sizes = [8, 1], strides = [1, 1]} : vector<8x3xf32> to vector<8x1xf32>
    %29 = vector.shape_cast %28 : vector<8x1xf32> to vector<1x8x1xf32>
    %30 = vector.shape_cast %27 : vector<16x640xf32> to vector<2x8x640xf32>
    %31 = vector.broadcast %29 : vector<1x8x1xf32> to vector<2x8x640xf32>
    %32 = arith.mulf %31, %30 : vector<2x8x640xf32>
    %33 = arith.addf %20, %32 : vector<2x8x640xf32>
    %34 = tpu.iota {dimensions = array<i32: 1>} : vector<5x640xi32>
    %35 = tpu.iota {dimensions = array<i32: 0>} : vector<5x640xi32>
    %c128_i32 = arith.constant 128 : i32
    %36 = vector.broadcast %c128_i32 : i32 to vector<5x640xi32>
    %37 = arith.muli %35, %36 : vector<5x640xi32>
    %38 = arith.cmpi sge, %34, %37 : vector<5x640xi32>
    %c128_i32_7 = arith.constant 128 : i32
    %39 = vector.broadcast %c128_i32_7 : i32 to vector<5x640xi32>
    %40 = arith.addi %37, %39 : vector<5x640xi32>
    %41 = arith.cmpi slt, %34, %40 : vector<5x640xi32>
    %42 = arith.andi %38, %41 : vector<5x640xi1>
    %43 = arith.extui %42 : vector<5x640xi1> to vector<5x640xi32>
    %44 = arith.sitofp %43 : vector<5x640xi32> to vector<5x640xf32>
    %cst_8 = arith.constant dense<0.000000e+00> : vector<8x640xf32>
    %45 = vector.multi_reduction <add>, %33, %cst_8 [0] : vector<2x8x640xf32> to vector<8x640xf32>
    %46 = arith.mulf %33, %33 : vector<2x8x640xf32>
    %cst_9 = arith.constant dense<0.000000e+00> : vector<8x640xf32>
    %47 = vector.multi_reduction <add>, %46, %cst_9 [0] : vector<2x8x640xf32> to vector<8x640xf32>
    %48 = tpu.concatenate %45, %47 in 0 : vector<8x640xf32>, vector<8x640xf32> -> vector<16x640xf32>
    %cst_10 = arith.constant dense<0.000000e+00> : vector<16x5xf32>
    %49 = tpu.matmul %48, %44, %cst_10 {dimension_numbers = #tpu.dot_dimension_numbers<[1], [1], [0], [0], [0, 0, 1, 0], [], []>} : vector<16x640xf32>, vector<5x640xf32>, vector<16x5xf32> -> vector<16x5xf32>
    %cst_11 = arith.constant 3.906250e-03 : f32
    %50 = vector.broadcast %cst_11 : f32 to vector<16x5xf32>
    %51 = arith.mulf %49, %50 : vector<16x5xf32>
    %52 = vector.extract_strided_slice %51 {offsets = [0, 0], sizes = [8, 5], strides = [1, 1]} : vector<16x5xf32> to vector<8x5xf32>
    %53 = vector.extract_strided_slice %51 {offsets = [8, 0], sizes = [8, 5], strides = [1, 1]} : vector<16x5xf32> to vector<8x5xf32>
    %54 = arith.mulf %52, %52 : vector<8x5xf32>
    %55 = arith.subf %53, %54 : vector<8x5xf32>
    %cst_12 = arith.constant 0.000000e+00 : f32
    %56 = vector.broadcast %cst_12 : f32 to vector<8x5xf32>
    %57 = arith.maximumf %55, %56 : vector<8x5xf32>
    %c0_13 = arith.constant 0 : index
    %c0_14 = arith.constant 0 : index
    %58 = vector.load %arg2[%c0_13, %c0_14] : memref<8x5xf32, #tpu.memory_space<vmem>>, vector<8x5xf32>
    %cst_15 = arith.constant 9.99999974E-6 : f32
    %59 = vector.broadcast %cst_15 : f32 to vector<8x5xf32>
    %60 = arith.addf %57, %59 : vector<8x5xf32>
    %61 = math.rsqrt %60 : vector<8x5xf32>
    %62 = arith.mulf %58, %61 : vector<8x5xf32>
    %c0_16 = arith.constant 0 : index
    %c0_17 = arith.constant 0 : index
    %63 = vector.load %arg3[%c0_16, %c0_17] : memref<8x5xf32, #tpu.memory_space<vmem>>, vector<8x5xf32>
    %64 = arith.mulf %52, %62 : vector<8x5xf32>
    %65 = arith.subf %63, %64 : vector<8x5xf32>
    %66 = tpu.concatenate %62, %65 in 0 : vector<8x5xf32>, vector<8x5xf32> -> vector<16x5xf32>
    %cst_18 = arith.constant dense<0.000000e+00> : vector<16x640xf32>
    %67 = tpu.matmul %66, %44, %cst_18 {dimension_numbers = #tpu.dot_dimension_numbers<[1], [0], [0], [1], [0, 0, 1, 1], [], []>} : vector<16x5xf32>, vector<5x640xf32>, vector<16x640xf32> -> vector<16x640xf32>
    %68 = vector.extract_strided_slice %67 {offsets = [0, 0], sizes = [8, 640], strides = [1, 1]} : vector<16x640xf32> to vector<8x640xf32>
    %69 = vector.shape_cast %68 : vector<8x640xf32> to vector<1x8x640xf32>
    %70 = vector.broadcast %69 : vector<1x8x640xf32> to vector<2x8x640xf32>
    %71 = arith.mulf %33, %70 : vector<2x8x640xf32>
    %72 = vector.extract_strided_slice %67 {offsets = [8, 0], sizes = [8, 640], strides = [1, 1]} : vector<16x640xf32> to vector<8x640xf32>
    %73 = vector.shape_cast %72 : vector<8x640xf32> to vector<1x8x640xf32>
    %74 = vector.broadcast %73 : vector<1x8x640xf32> to vector<2x8x640xf32>
    %75 = arith.addf %71, %74 : vector<2x8x640xf32>
    %76 = tpu.iota {dimensions = array<i32: 1>} : vector<32x640xi32>
    %c31_i32 = arith.constant 31 : i32
    %77 = vector.broadcast %c31_i32 : i32 to vector<32x640xi32>
    %78 = arith.andi %76, %77 : vector<32x640xi32>
    %79 = tpu.iota {dimensions = array<i32: 0>} : vector<32x640xi32>
    %80 = arith.cmpi eq, %78, %79 : vector<32x640xi32>
    %81 = arith.extui %80 : vector<32x640xi1> to vector<32x640xi32>
    %82 = arith.sitofp %81 : vector<32x640xi32> to vector<32x640xf32>
    %83 = vector.shape_cast %75 : vector<2x8x640xf32> to vector<16x640xf32>
    %cst_19 = arith.constant dense<0.000000e+00> : vector<16x32xf32>
    %84 = tpu.matmul %83, %82, %cst_19 {dimension_numbers = #tpu.dot_dimension_numbers<[1], [1], [0], [0], [0, 0, 1, 0], [], []>} : vector<16x640xf32>, vector<32x640xf32>, vector<16x32xf32> -> vector<16x32xf32>
    %cst_20 = arith.constant 5.000000e-02 : f32
    %85 = vector.broadcast %cst_20 : f32 to vector<16x32xf32>
    %86 = arith.mulf %84, %85 : vector<16x32xf32>
    %87 = tpu.iota {dimensions = array<i32: 1>} : vector<1x32xi32>
    %c0_21 = arith.constant 0 : index
    %c0_22 = arith.constant 0 : index
    %88 = vector.load %arg4[%c0_21, %c0_22] : memref<8x3xf32, #tpu.memory_space<vmem>>, vector<8x3xf32>
    %89 = vector.shape_cast %86 : vector<16x32xf32> to vector<2x8x32xf32>
    %90 = vector.extract_strided_slice %88 {offsets = [0, 1], sizes = [8, 1], strides = [1, 1]} : vector<8x3xf32> to vector<8x1xf32>
    %91 = vector.shape_cast %90 : vector<8x1xf32> to vector<1x8x1xf32>
    %92 = vector.broadcast %91 : vector<1x8x1xf32> to vector<2x8x32xf32>
    %93 = arith.mulf %92, %89 : vector<2x8x32xf32>
    %c1_i32 = arith.constant 1 : i32
    %94 = vector.broadcast %c1_i32 : i32 to vector<1x32xi32>
    %95 = arith.cmpi sge, %87, %94 : vector<1x32xi32>
    %c1_i32_23 = arith.constant 1 : i32
    %96 = tpu.dynamic_rotate %86 by %c1_i32_23 dim 1 : vector<16x32xf32>, i32 -> vector<16x32xf32>
    %cst_24 = arith.constant 0.000000e+00 : f32
    %97 = vector.shape_cast %95 : vector<1x32xi1> to vector<1x32xi1>
    %98 = vector.broadcast %97 : vector<1x32xi1> to vector<16x32xi1>
    %99 = vector.broadcast %cst_24 : f32 to vector<16x32xf32>
    %100 = arith.select %98, %96, %99 : vector<16x32xi1>, vector<16x32xf32>
    %101 = vector.extract_strided_slice %88 {offsets = [0, 0], sizes = [8, 1], strides = [1, 1]} : vector<8x3xf32> to vector<8x1xf32>
    %102 = vector.shape_cast %101 : vector<8x1xf32> to vector<1x8x1xf32>
    %103 = vector.shape_cast %100 : vector<16x32xf32> to vector<2x8x32xf32>
    %104 = vector.broadcast %102 : vector<1x8x1xf32> to vector<2x8x32xf32>
    %105 = arith.mulf %104, %103 : vector<2x8x32xf32>
    %106 = arith.addf %93, %105 : vector<2x8x32xf32>
    %c31_i32_25 = arith.constant 31 : i32
    %107 = vector.broadcast %c31_i32_25 : i32 to vector<1x32xi32>
    %108 = arith.cmpi slt, %87, %107 : vector<1x32xi32>
    %c31_i32_26 = arith.constant 31 : i32
    %109 = tpu.dynamic_rotate %86 by %c31_i32_26 dim 1 : vector<16x32xf32>, i32 -> vector<16x32xf32>
    %cst_27 = arith.constant 0.000000e+00 : f32
    %110 = vector.shape_cast %108 : vector<1x32xi1> to vector<1x32xi1>
    %111 = vector.broadcast %110 : vector<1x32xi1> to vector<16x32xi1>
    %112 = vector.broadcast %cst_27 : f32 to vector<16x32xf32>
    %113 = arith.select %111, %109, %112 : vector<16x32xi1>, vector<16x32xf32>
    %114 = vector.extract_strided_slice %88 {offsets = [0, 2], sizes = [8, 1], strides = [1, 1]} : vector<8x3xf32> to vector<8x1xf32>
    %115 = vector.shape_cast %114 : vector<8x1xf32> to vector<1x8x1xf32>
    %116 = vector.shape_cast %113 : vector<16x32xf32> to vector<2x8x32xf32>
    %117 = vector.broadcast %115 : vector<1x8x1xf32> to vector<2x8x32xf32>
    %118 = arith.mulf %117, %116 : vector<2x8x32xf32>
    %119 = arith.addf %106, %118 : vector<2x8x32xf32>
    %cst_28 = arith.constant dense<0.000000e+00> : vector<2x8xf32>
    %120 = vector.multi_reduction <add>, %119, %cst_28 [2] : vector<2x8x32xf32> to vector<2x8xf32>
    %121 = vector.shape_cast %120 : vector<2x8xf32> to vector<2x8x1xf32>
    %cst_29 = arith.constant dense<0.000000e+00> : vector<8x1xf32>
    %122 = vector.multi_reduction <add>, %121, %cst_29 [0] : vector<2x8x1xf32> to vector<8x1xf32>
    %cst_30 = arith.constant 6.400000e+01 : f32
    %123 = vector.broadcast %cst_30 : f32 to vector<8x1xf32>
    %124 = arith.divf %122, %123 : vector<8x1xf32>
    %125 = arith.mulf %119, %119 : vector<2x8x32xf32>
    %cst_31 = arith.constant dense<0.000000e+00> : vector<2x8xf32>
    %126 = vector.multi_reduction <add>, %125, %cst_31 [2] : vector<2x8x32xf32> to vector<2x8xf32>
    %127 = vector.shape_cast %126 : vector<2x8xf32> to vector<2x8x1xf32>
    %cst_32 = arith.constant dense<0.000000e+00> : vector<8x1xf32>
    %128 = vector.multi_reduction <add>, %127, %cst_32 [0] : vector<2x8x1xf32> to vector<8x1xf32>
    %cst_33 = arith.constant 6.400000e+01 : f32
    %129 = vector.broadcast %cst_33 : f32 to vector<8x1xf32>
    %130 = arith.divf %128, %129 : vector<8x1xf32>
    %131 = arith.mulf %124, %124 : vector<8x1xf32>
    %132 = arith.subf %130, %131 : vector<8x1xf32>
    %cst_34 = arith.constant 0.000000e+00 : f32
    %133 = vector.broadcast %cst_34 : f32 to vector<8x1xf32>
    %134 = arith.maximumf %132, %133 : vector<8x1xf32>
    %c0_35 = arith.constant 0 : index
    %c0_36 = arith.constant 0 : index
    %135 = vector.load %arg5[%c0_35, %c0_36] : memref<8x1xf32, #tpu.memory_space<vmem>>, vector<8x1xf32>
    %cst_37 = arith.constant 9.99999974E-6 : f32
    %136 = vector.broadcast %cst_37 : f32 to vector<8x1xf32>
    %137 = arith.addf %134, %136 : vector<8x1xf32>
    %138 = math.rsqrt %137 : vector<8x1xf32>
    %139 = arith.mulf %135, %138 : vector<8x1xf32>
    %c0_38 = arith.constant 0 : index
    %c0_39 = arith.constant 0 : index
    %140 = vector.load %arg6[%c0_38, %c0_39] : memref<8x1xf32, #tpu.memory_space<vmem>>, vector<8x1xf32>
    %141 = arith.mulf %124, %139 : vector<8x1xf32>
    %142 = arith.subf %140, %141 : vector<8x1xf32>
    %143 = vector.shape_cast %139 : vector<8x1xf32> to vector<1x8x1xf32>
    %144 = vector.broadcast %143 : vector<1x8x1xf32> to vector<2x8x32xf32>
    %145 = arith.mulf %119, %144 : vector<2x8x32xf32>
    %146 = vector.shape_cast %142 : vector<8x1xf32> to vector<1x8x1xf32>
    %147 = vector.broadcast %146 : vector<1x8x1xf32> to vector<2x8x32xf32>
    %148 = arith.addf %145, %147 : vector<2x8x32xf32>
    %cst_40 = arith.constant 0.000000e+00 : f32
    %149 = vector.broadcast %cst_40 : f32 to vector<2x8x32xf32>
    %150 = arith.maximumf %148, %149 : vector<2x8x32xf32>
    %c0_41 = arith.constant 0 : index
    %c0_42 = arith.constant 0 : index
    %151 = vector.load %arg7[%c0_41, %c0_42] : memref<8x8xf32, #tpu.memory_space<vmem>>, vector<8x8xf32>
    %152 = vector.extract_strided_slice %150 {offsets = [0, 0, 0], sizes = [1, 8, 32], strides = [1, 1, 1]} : vector<2x8x32xf32> to vector<1x8x32xf32>
    %153 = vector.shape_cast %152 : vector<1x8x32xf32> to vector<8x32xf32>
    %cst_43 = arith.constant dense<0.000000e+00> : vector<8x32xf32>
    %154 = tpu.matmul %151, %153, %cst_43 {dimension_numbers = #tpu.dot_dimension_numbers<[1], [0], [0], [1], [0, 0, 1, 1], [], []>} : vector<8x8xf32>, vector<8x32xf32>, vector<8x32xf32> -> vector<8x32xf32>
    %155 = vector.extract_strided_slice %150 {offsets = [1, 0, 0], sizes = [1, 8, 32], strides = [1, 1, 1]} : vector<2x8x32xf32> to vector<1x8x32xf32>
    %156 = vector.shape_cast %155 : vector<1x8x32xf32> to vector<8x32xf32>
    %cst_44 = arith.constant dense<0.000000e+00> : vector<8x32xf32>
    %157 = tpu.matmul %151, %156, %cst_44 {dimension_numbers = #tpu.dot_dimension_numbers<[1], [0], [0], [1], [0, 0, 1, 1], [], []>} : vector<8x8xf32>, vector<8x32xf32>, vector<8x32xf32> -> vector<8x32xf32>
    %158 = tpu.concatenate %154, %157 in 0 : vector<8x32xf32>, vector<8x32xf32> -> vector<16x32xf32>
    %cst_45 = arith.constant dense<0.000000e+00> : vector<16x640xf32>
    %159 = tpu.matmul %158, %82, %cst_45 {dimension_numbers = #tpu.dot_dimension_numbers<[1], [0], [0], [1], [0, 0, 1, 1], [], []>} : vector<16x32xf32>, vector<32x640xf32>, vector<16x640xf32> -> vector<16x640xf32>
    %160 = vector.shape_cast %75 : vector<2x8x640xf32> to vector<16x640xf32>
    %161 = arith.addf %1, %160 : vector<16x640xf32>
    %162 = arith.addf %161, %159 : vector<16x640xf32>
    %cst_46 = arith.constant 0.000000e+00 : f32
    %163 = vector.broadcast %cst_46 : f32 to vector<16x640xf32>
    %164 = arith.maximumf %162, %163 : vector<16x640xf32>
    %165 = vector.shape_cast %164 : vector<16x640xf32> to vector<2x8x640xf32>
    %c0_47 = arith.constant 0 : index
    %c0_48 = arith.constant 0 : index
    %c0_49 = arith.constant 0 : index
    %166 = vector.load %arg8[%c0_47, %c0_48, %c0_49] : memref<2x8x640xf32, #tpu.memory_space<vmem>>, vector<2x8x640xf32>
    tpu.vector_store %arg8[%c0_47, %c0_48, %c0_49], %165 {strides = array<i32>} : memref<2x8x640xf32, #tpu.memory_space<vmem>>, vector<2x8x640xf32>,
    return
  }
}

</mosaic_0001>

<llo_original>
// kernel: broadcasted_block.1
$region0: #{broadcasted_block.1}
  #allocation0 [shape = 'u32[]', space=smem, size = 0x4, offset = 0x4, fixed_abs, tag = 'smem constant byte address 0x4 - core index']
  #allocation1 [shape = 'u32[144,128]{1,0:T(1,128)}', space=vmem, size = 0x12000, scoped, tag = 'internal scratch']
  %s0 = inlined_call_operand.vmem [shape: f32[2,8,640], index: 0, kind: input, shape index: {}]
  %s1 = inlined_call_operand.vmem [shape: f32[8,3], index: 1, kind: input, shape index: {}]
  %s2 = inlined_call_operand.vmem [shape: f32[8,5], index: 2, kind: input, shape index: {}]
  %s3 = inlined_call_operand.vmem [shape: f32[8,5], index: 3, kind: input, shape index: {}]
  %s4 = inlined_call_operand.vmem [shape: f32[8,3], index: 4, kind: input, shape index: {}]
  %s5 = inlined_call_operand.vmem [shape: f32[8,1], index: 5, kind: input, shape index: {}]
  %s6 = inlined_call_operand.vmem [shape: f32[8,1], index: 6, kind: input, shape index: {}]
  %s7 = inlined_call_operand.vmem [shape: f32[8,8], index: 7, kind: input, shape index: {}]
  %s8 = inlined_call_operand.vmem [shape: f32[2,8,640], index: 8, kind: output, shape index: {}]
  %s9 = sld [smem:[#allocation0]]
  $region42: #{broadcasted_block.1} parent=0
    _
  %s11 = ssub.s32 1, %s9
  %s12 = scalar_select 0, %s11, %s9
  // Predicated region
  $region2: #{broadcasted_block.1} parent=0 // pred_check
    _
  $region3: #{broadcasted_block.1} parent=0 // pred_check_branch
    %14 = sbr.rel (0) target = $region5
  $region4: #{broadcasted_block.1} parent=0 // pred_region
    _
  $region5: #{broadcasted_block.1} parent=0 // pred_fallthru
    _
  // Predicated region
  $region6: #{broadcasted_block.1} parent=0 // pred_check
    _
  $region7: #{broadcasted_block.1} parent=0 // pred_check_branch
    %16 = sbr.rel (0) target = $region9
  $region8: #{broadcasted_block.1} parent=0 // pred_region
    _
  $region9: #{broadcasted_block.1} parent=0 // pred_fallthru
    _
  // Predicated region
  $region10: #{broadcasted_block.1} parent=0 // pred_check
    _
  $region11: #{broadcasted_block.1} parent=0 // pred_check_branch
    %18 = sbr.rel (0) target = $region13
  $region12: #{broadcasted_block.1} parent=0 // pred_region
    _
  $region13: #{broadcasted_block.1} parent=0 // pred_fallthru
    _
  // Predicated region
  $region14: #{broadcasted_block.1} parent=0 // pred_check
    _
  $region15: #{broadcasted_block.1} parent=0 // pred_check_branch
    %20 = sbr.rel (0) target = $region17
  $region16: #{broadcasted_block.1} parent=0 // pred_region
    _
  $region17: #{broadcasted_block.1} parent=0 // pred_fallthru
    _
  // Predicated region
  $region18: #{broadcasted_block.1} parent=0 // pred_check
    _
  $region19: #{broadcasted_block.1} parent=0 // pred_check_branch
    %22 = sbr.rel (0) target = $region21
  $region20: #{broadcasted_block.1} parent=0 // pred_region
    _
  $region21: #{broadcasted_block.1} parent=0 // pred_fallthru
    _
  // Predicated region
  $region22: #{broadcasted_block.1} parent=0 // pred_check
    _
  $region23: #{broadcasted_block.1} parent=0 // pred_check_branch
    %24 = sbr.rel (0) target = $region25
  $region24: #{broadcasted_block.1} parent=0 // pred_region
    _
  $region25: #{broadcasted_block.1} parent=0 // pred_fallthru
    _
  // Predicated region
  $region26: #{broadcasted_block.1} parent=0 // pred_check
    _
  $region27: #{broadcasted_block.1} parent=0 // pred_check_branch
    %26 = sbr.rel (0) target = $region29
  $region28: #{broadcasted_block.1} parent=0 // pred_region
    _
  $region29: #{broadcasted_block.1} parent=0 // pred_fallthru
    _
  // Predicated region
  $region30: #{broadcasted_block.1} parent=0 // pred_check
    _
  $region31: #{broadcasted_block.1} parent=0 // pred_check_branch
    %28 = sbr.rel (0) target = $region33
  $region32: #{broadcasted_block.1} parent=0 // pred_region
    _
  $region33: #{broadcasted_block.1} parent=0 // pred_fallthru
    _
  %v29 = vld [vmem:[%s0] sm:$0xff]
  %v30 = vld [vmem:[%s0 + $0x8] sm:$0xff]
  %v31 = vld [vmem:[%s0 + $0x10] sm:$0xff]
  %v32 = vld [vmem:[%s0 + $0x18] sm:$0xff]
  %v33 = vld [vmem:[%s0 + $0x20] sm:$0xff]
  %v34 = vld [vmem:[%s0 + $0x28] sm:$0xff]
  %v35 = vld [vmem:[%s0 + $0x30] sm:$0xff]
  %v36 = vld [vmem:[%s0 + $0x38] sm:$0xff]
  %v37 = vld [vmem:[%s0 + $0x40] sm:$0xff]
  %v38 = vld [vmem:[%s0 + $0x48] sm:$0xff]
  %v39 = vlaneseq
  %v40 = vand.u32 %v39, 127
  %v41 = vadd.s32 %v40, 128
  %v42 = vadd.s32 %v40, 256
  %v43 = vadd.s32 %v40, 384
  %v44 = vadd.s32 %v40, 512
  %v45 = vld [vmem:[%s1] sm:$0xff]
  %47 = vset.pattern.permute.xlu0 1
  %48 = vperm.xlu0 %47, %v45
  %v49 = vpop.permute.xlu0 %48
  %v51 = vmul.f32 %v49, %v29
  %v52 = vmul.f32 %v49, %v30
  %v53 = vmul.f32 %v49, %v31
  %v54 = vmul.f32 %v49, %v32
  %v55 = vmul.f32 %v49, %v33
  %v56 = vmul.f32 %v49, %v34
  %v57 = vmul.f32 %v49, %v35
  %v58 = vmul.f32 %v49, %v36
  %v59 = vmul.f32 %v49, %v37
  %v60 = vmul.f32 %v49, %v38
  %vm61 = vcmp.ge.s32.totalorder %v40, 32
  %vm62 = vcmp.ge.s32.totalorder %v41, 32
  %vm63 = vcmp.ge.s32.totalorder %v42, 32
  %vm64 = vcmp.ge.s32.totalorder %v43, 32
  %vm65 = vcmp.ge.s32.totalorder %v44, 32
  %66 = vrot.lane.b32.xlu0 %v29, 32
  %v67 = vpop.permute.xlu0 %66
  %68 = vrot.lane.b32.xlu0 %v34, 32
  %v69 = vpop.permute.xlu0 %68
  %70 = vrot.lane.b32.xlu0 %v30, 32
  %v71 = vpop.permute.xlu0 %70
  %72 = vrot.lane.b32.xlu0 %v35, 32
  %v73 = vpop.permute.xlu0 %72
  %74 = vrot.lane.b32.xlu0 %v31, 32
  %v75 = vpop.permute.xlu0 %74
  %76 = vrot.lane.b32.xlu0 %v36, 32
  %v77 = vpop.permute.xlu0 %76
  %78 = vrot.lane.b32.xlu0 %v32, 32
  %v79 = vpop.permute.xlu0 %78
  %80 = vrot.lane.b32.xlu0 %v37, 32
  %v81 = vpop.permute.xlu0 %80
  %82 = vrot.lane.b32.xlu0 %v33, 32
  %v83 = vpop.permute.xlu0 %82
  %84 = vrot.lane.b32.xlu0 %v38, 32
  %v85 = vpop.permute.xlu0 %84
  %vm86 = vcmp.lt.s32.totalorder %v40, 32
  %v87 = vsel %vm86, %v79, %v83
  %v88 = vsel %vm86, %v81, %v85
  %v89 = vsel %vm86, %v75, %v79
  %v90 = vsel %vm86, %v77, %v81
  %v91 = vsel %vm86, %v71, %v75
  %v92 = vsel %vm86, %v73, %v77
  %v93 = vsel %vm86, %v67, %v71
  %v94 = vsel %vm86, %v69, %v73
  %v95 = vsel %vm86, %v83, %v67
  %v96 = vsel %vm86, %v85, %v69
  %v97 = vsel %vm61, 1, 0
  %v98 = vsel %vm62, 1, 0
  %v99 = vsel %vm63, 1, 0
  %v100 = vsel %vm64, 1, 0
  %v101 = vsel %vm65, 1, 0
  %vm102 = vcmp.eq.s32.totalorder %v97, 1
  %vm103 = vcmp.eq.s32.totalorder %v98, 1
  %vm104 = vcmp.eq.s32.totalorder %v99, 1
  %vm105 = vcmp.eq.s32.totalorder %v100, 1
  %vm106 = vcmp.eq.s32.totalorder %v101, 1
  %v107 = vsel %vm102, %v95, 0.0
  %v108 = vsel %vm103, %v93, 0.0
  %v109 = vsel %vm104, %v91, 0.0
  %v110 = vsel %vm105, %v89, 0.0
  %v111 = vsel %vm106, %v87, 0.0
  %v112 = vsel %vm102, %v96, 0.0
  %v113 = vsel %vm103, %v94, 0.0
  %v114 = vsel %vm104, %v92, 0.0
  %v115 = vsel %vm105, %v90, 0.0
  %v116 = vsel %vm106, %v88, 0.0
  %117 = vset.pattern.permute.xlu0 0
  %118 = vperm.xlu0 %117, %v45
  %v119 = vpop.permute.xlu0 %118
  %v121 = vmul.f32 %v119, %v107
  %v122 = vmul.f32 %v119, %v108
  %v123 = vmul.f32 %v119, %v109
  %v124 = vmul.f32 %v119, %v110
  %v125 = vmul.f32 %v119, %v111
  %v126 = vmul.f32 %v119, %v112
  %v127 = vmul.f32 %v119, %v113
  %v128 = vmul.f32 %v119, %v114
  %v129 = vmul.f32 %v119, %v115
  %v130 = vmul.f32 %v119, %v116
  %v131 = vadd.f32 %v51, %v121
  %v132 = vadd.f32 %v52, %v122
  %v133 = vadd.f32 %v53, %v123
  %v134 = vadd.f32 %v54, %v124
  %v135 = vadd.f32 %v55, %v125
  %v136 = vadd.f32 %v56, %v126
  %v137 = vadd.f32 %v57, %v127
  %v138 = vadd.f32 %v58, %v128
  %v139 = vadd.f32 %v59, %v129
  %v140 = vadd.f32 %v60, %v130
  %vm141 = vcmp.lt.s32.totalorder %v40, 608
  %vm142 = vcmp.lt.s32.totalorder %v41, 608
  %vm143 = vcmp.lt.s32.totalorder %v42, 608
  %vm144 = vcmp.lt.s32.totalorder %v43, 608
  %vm145 = vcmp.lt.s32.totalorder %v44, 608
  %146 = vrot.lane.b32.xlu0 %v29, 96
  %v147 = vpop.permute.xlu0 %146
  %148 = vrot.lane.b32.xlu0 %v34, 96
  %v149 = vpop.permute.xlu0 %148
  %150 = vrot.lane.b32.xlu0 %v30, 96
  %v151 = vpop.permute.xlu0 %150
  %152 = vrot.lane.b32.xlu0 %v35, 96
  %v153 = vpop.permute.xlu0 %152
  %154 = vrot.lane.b32.xlu0 %v31, 96
  %v155 = vpop.permute.xlu0 %154
  %156 = vrot.lane.b32.xlu0 %v36, 96
  %v157 = vpop.permute.xlu0 %156
  %158 = vrot.lane.b32.xlu0 %v32, 96
  %v159 = vpop.permute.xlu0 %158
  %160 = vrot.lane.b32.xlu0 %v37, 96
  %v161 = vpop.permute.xlu0 %160
  %162 = vrot.lane.b32.xlu0 %v33, 96
  %v163 = vpop.permute.xlu0 %162
  %164 = vrot.lane.b32.xlu0 %v38, 96
  %v165 = vpop.permute.xlu0 %164
  %vm166 = vcmp.lt.s32.totalorder %v40, 96
  %v167 = vsel %vm166, %v159, %v163
  %v168 = vsel %vm166, %v161, %v165
  %v169 = vsel %vm166, %v155, %v159
  %v170 = vsel %vm166, %v157, %v161
  %v171 = vsel %vm166, %v151, %v155
  %v172 = vsel %vm166, %v153, %v157
  %v173 = vsel %vm166, %v147, %v151
  %v174 = vsel %vm166, %v149, %v153
  %v175 = vsel %vm166, %v163, %v147
  %v176 = vsel %vm166, %v165, %v149
  %v177 = vsel %vm141, 1, 0
  %v178 = vsel %vm142, 1, 0
  %v179 = vsel %vm143, 1, 0
  %v180 = vsel %vm144, 1, 0
  %v181 = vsel %vm145, 1, 0
  %vm182 = vcmp.eq.s32.totalorder %v177, 1
  %vm183 = vcmp.eq.s32.totalorder %v178, 1
  %vm184 = vcmp.eq.s32.totalorder %v179, 1
  %vm185 = vcmp.eq.s32.totalorder %v180, 1
  %vm186 = vcmp.eq.s32.totalorder %v181, 1
  %v187 = vsel %vm182, %v173, 0.0
  %v188 = vsel %vm183, %v171, 0.0
  %v189 = vsel %vm184, %v169, 0.0
  %v190 = vsel %vm185, %v167, 0.0
  %v191 = vsel %vm186, %v175, 0.0
  %v192 = vsel %vm182, %v174, 0.0
  %v193 = vsel %vm183, %v172, 0.0
  %v194 = vsel %vm184, %v170, 0.0
  %v195 = vsel %vm185, %v168, 0.0
  %v196 = vsel %vm186, %v176, 0.0
  %197 = vset.pattern.permute.xlu0 2
  %198 = vperm.xlu0 %197, %v45
  %v199 = vpop.permute.xlu0 %198
  %v201 = vmul.f32 %v199, %v187
  %v202 = vmul.f32 %v199, %v188
  %v203 = vmul.f32 %v199, %v189
  %v204 = vmul.f32 %v199, %v190
  %v205 = vmul.f32 %v199, %v191
  %v206 = vmul.f32 %v199, %v192
  %v207 = vmul.f32 %v199, %v193
  %v208 = vmul.f32 %v199, %v194
  %v209 = vmul.f32 %v199, %v195
  %v210 = vmul.f32 %v199, %v196
  %v211 = vadd.f32 %v131, %v201
  %v212 = vadd.f32 %v132, %v202
  %v213 = vadd.f32 %v133, %v203
  %v214 = vadd.f32 %v134, %v204
  %v215 = vadd.f32 %v135, %v205
  %v216 = vadd.f32 %v136, %v206
  %v217 = vadd.f32 %v137, %v207
  %v218 = vadd.f32 %v138, %v208
  %v219 = vadd.f32 %v139, %v209
  %v220 = vadd.f32 %v140, %v210
  %v221 = vlaneseq
  %v222 = vshrl.u32 %v221, 7
  %v223 = vmul.u32 %v222, 128
  %vm224 = vcmp.ge.s32.totalorder %v40, %v223
  %vm225 = vcmp.ge.s32.totalorder %v41, %v223
  %vm226 = vcmp.ge.s32.totalorder %v42, %v223
  %vm227 = vcmp.ge.s32.totalorder %v43, %v223
  %vm228 = vcmp.ge.s32.totalorder %v44, %v223
  %v229 = vadd.s32 %v223, 128
  %vm230 = vcmp.lt.s32.totalorder %v40, %v229
  %vm231 = vcmp.lt.s32.totalorder %v41, %v229
  %vm232 = vcmp.lt.s32.totalorder %v42, %v229
  %vm233 = vcmp.lt.s32.totalorder %v43, %v229
  %vm234 = vcmp.lt.s32.totalorder %v44, %v229
  %vm235 = vmand %vm224, %vm230
  %vm236 = vmand %vm225, %vm231
  %vm237 = vmand %vm226, %vm232
  %vm238 = vmand %vm227, %vm233
  %vm239 = vmand %vm228, %vm234
  %v240 = vsel %vm235, 1, 0
  %v241 = vsel %vm236, 1, 0
  %v242 = vsel %vm237, 1, 0
  %v243 = vsel %vm238, 1, 0
  %v244 = vsel %vm239, 1, 0
  %v245 = vcvt.s32.f32 %v240
  %v246 = vcvt.s32.f32 %v241
  %v247 = vcvt.s32.f32 %v242
  %v248 = vcvt.s32.f32 %v243
  %v249 = vcvt.s32.f32 %v244
  %v250 = vadd.f32 %v211, %v216
  %v251 = vadd.f32 %v212, %v217
  %v252 = vadd.f32 %v213, %v218
  %v253 = vadd.f32 %v214, %v219
  %v254 = vadd.f32 %v215, %v220
  %v255 = vmul.f32 %v211, %v211
  %v256 = vmul.f32 %v212, %v212
  %v257 = vmul.f32 %v213, %v213
  %v258 = vmul.f32 %v214, %v214
  %v259 = vmul.f32 %v215, %v215
  %v260 = vmul.f32 %v216, %v216
  %v261 = vmul.f32 %v217, %v217
  %v262 = vmul.f32 %v218, %v218
  %v263 = vmul.f32 %v219, %v219
  %v264 = vmul.f32 %v220, %v220
  %v265 = vadd.f32 %v255, %v260
  %v266 = vadd.f32 %v256, %v261
  %v267 = vadd.f32 %v257, %v262
  %v268 = vadd.f32 %v258, %v263
  %v269 = vadd.f32 %v259, %v264
  %270 = vmatprep.subr.mxu0 0.0
  %271 = vmatpush1.xpose.msra.mxu0 0.0
  %272 = vmatprep.subr.mxu0 0.0
  %273 = vmatpush1.xpose.msra.mxu0 0.0
  %274 = vmatprep.subr.mxu0 0.0
  %275 = vmatpush1.xpose.msra.mxu0 0.0
  %276 = vmatprep.subr.mxu0 0.0
  %277 = vmatpush1.xpose.msra.mxu0 0.0
  %278 = vmatprep.subr.mxu0 0.0
  %279 = vmatpush1.xpose.msra.mxu0 0.0
  %280 = vmatprep.subr.mxu0 0.0
  %281 = vmatpush1.xpose.msra.mxu0 0.0
  %282 = vmatprep.subr.mxu0 0.0
  %283 = vmatpush1.xpose.msra.mxu0 0.0
  %284 = vmatprep.subr.mxu0 0.0
  %285 = vmatpush1.xpose.msra.mxu0 0.0
  %286 = vmatprep.subr.mxu0 0.0
  %287 = vmatpush1.xpose.msra.mxu0 0.0
  %288 = vmatprep.subr.mxu0 0.0
  %289 = vmatpush1.xpose.msra.mxu0 0.0
  %290 = vmatprep.subr.mxu0 0.0
  %291 = vmatpush1.xpose.msra.mxu0 0.0
  %292 = vmatprep.subr.mxu0 0.0
  %293 = vmatpush1.xpose.msra.mxu0 0.0
  %294 = vmatprep.subr.mxu0 0.0
  %295 = vmatpush1.xpose.msra.mxu0 0.0
  %296 = vmatprep.subr.mxu0 0.0
  %297 = vmatpush1.xpose.msra.mxu0 0.0
  %298 = vmatprep.subr.mxu0 0.0
  %299 = vmatpush1.xpose.msra.mxu0 0.0
  %300 = vmatprep.subr.mxu0 %v246
  %301 = vmatpush1.xpose.msra.mxu0 %v245
  %302 = vmatprep.subr.mxu0 0.0
  %303 = vmatpush2.xpose.msra.mxu0 0.0
  %304 = vmatprep.subr.mxu0 0.0
  %305 = vmatpush2.xpose.msra.mxu0 0.0
  %306 = vmatprep.subr.mxu0 0.0
  %307 = vmatpush2.xpose.msra.mxu0 0.0
  %308 = vmatprep.subr.mxu0 0.0
  %309 = vmatpush2.xpose.msra.mxu0 0.0
  %310 = vmatprep.subr.mxu0 0.0
  %311 = vmatpush2.xpose.msra.mxu0 0.0
  %312 = vmatprep.subr.mxu0 0.0
  %313 = vmatpush2.xpose.msra.mxu0 0.0
  %314 = vmatprep.subr.mxu0 0.0
  %315 = vmatpush2.xpose.msra.mxu0 0.0
  %316 = vmatprep.subr.mxu0 0.0
  %317 = vmatpush2.xpose.msra.mxu0 0.0
  %318 = vmatprep.subr.mxu0 0.0
  %319 = vmatpush2.xpose.msra.mxu0 0.0
  %320 = vmatprep.subr.mxu0 0.0
  %321 = vmatpush2.xpose.msra.mxu0 0.0
  %322 = vmatprep.subr.mxu0 0.0
  %323 = vmatpush2.xpose.msra.mxu0 0.0
  %324 = vmatprep.subr.mxu0 0.0
  %325 = vmatpush2.xpose.msra.mxu0 0.0
  %326 = vmatprep.subr.mxu0 0.0
  %327 = vmatpush2.xpose.msra.mxu0 0.0
  %328 = vmatprep.subr.mxu0 0.0
  %329 = vmatpush2.xpose.msra.mxu0 0.0
  %330 = vmatprep.subr.mxu0 0.0
  %331 = vmatpush2.xpose.msra.mxu0 0.0
  %332 = vmatprep.subr.mxu0 0.0
  %333 = vmatpush2.xpose.msra.mxu0 0.0
  %334 = vmatprep.mubr.f32.mxu0 %v251
  %335 = vmatmul.mubr.f32.gmra.mxu0 %v250
  %v336 = vpop.f32.mrf.mxu0
  %v337 = vadd.f32 0.0, %v336
  %v338 = vpop.f32.mrf.mxu0
  %339 = vmatprep.mubr.f32.mxu0 %v266
  %340 = vmatmul.mubr.f32.gmra.mxu0 %v265
  %v341 = vpop.f32.mrf.mxu0
  %v342 = vadd.f32 0.0, %v341
  %v343 = vpop.f32.mrf.mxu0
  %344 = vdwg.mxu0
  %345 = vmatprep.subr.mxu0 0.0
  %346 = vmatpush1.xpose.msra.mxu0 0.0
  %347 = vmatprep.subr.mxu0 0.0
  %348 = vmatpush1.xpose.msra.mxu0 0.0
  %349 = vmatprep.subr.mxu0 0.0
  %350 = vmatpush1.xpose.msra.mxu0 0.0
  %351 = vmatprep.subr.mxu0 0.0
  %352 = vmatpush1.xpose.msra.mxu0 0.0
  %353 = vmatprep.subr.mxu0 0.0
  %354 = vmatpush1.xpose.msra.mxu0 0.0
  %355 = vmatprep.subr.mxu0 0.0
  %356 = vmatpush1.xpose.msra.mxu0 0.0
  %357 = vmatprep.subr.mxu0 0.0
  %358 = vmatpush1.xpose.msra.mxu0 0.0
  %359 = vmatprep.subr.mxu0 0.0
  %360 = vmatpush1.xpose.msra.mxu0 0.0
  %361 = vmatprep.subr.mxu0 0.0
  %362 = vmatpush1.xpose.msra.mxu0 0.0
  %363 = vmatprep.subr.mxu0 0.0
  %364 = vmatpush1.xpose.msra.mxu0 0.0
  %365 = vmatprep.subr.mxu0 0.0
  %366 = vmatpush1.xpose.msra.mxu0 0.0
  %367 = vmatprep.subr.mxu0 0.0
  %368 = vmatpush1.xpose.msra.mxu0 0.0
  %369 = vmatprep.subr.mxu0 0.0
  %370 = vmatpush1.xpose.msra.mxu0 0.0
  %371 = vmatprep.subr.mxu0 0.0
  %372 = vmatpush1.xpose.msra.mxu0 0.0
  %373 = vmatprep.subr.mxu0 0.0
  %374 = vmatpush1.xpose.msra.mxu0 0.0
  %375 = vmatprep.subr.mxu0 %v248
  %376 = vmatpush1.xpose.msra.mxu0 %v247
  %377 = vmatprep.subr.mxu0 0.0
  %378 = vmatpush2.xpose.msra.mxu0 0.0
  %379 = vmatprep.subr.mxu0 0.0
  %380 = vmatpush2.xpose.msra.mxu0 0.0
  %381 = vmatprep.subr.mxu0 0.0
  %382 = vmatpush2.xpose.msra.mxu0 0.0
  %383 = vmatprep.subr.mxu0 0.0
  %384 = vmatpush2.xpose.msra.mxu0 0.0
  %385 = vmatprep.subr.mxu0 0.0
  %386 = vmatpush2.xpose.msra.mxu0 0.0
  %387 = vmatprep.subr.mxu0 0.0
  %388 = vmatpush2.xpose.msra.mxu0 0.0
  %389 = vmatprep.subr.mxu0 0.0
  %390 = vmatpush2.xpose.msra.mxu0 0.0
  %391 = vmatprep.subr.mxu0 0.0
  %392 = vmatpush2.xpose.msra.mxu0 0.0
  %393 = vmatprep.subr.mxu0 0.0
  %394 = vmatpush2.xpose.msra.mxu0 0.0
  %395 = vmatprep.subr.mxu0 0.0
  %396 = vmatpush2.xpose.msra.mxu0 0.0
  %397 = vmatprep.subr.mxu0 0.0
  %398 = vmatpush2.xpose.msra.mxu0 0.0
  %399 = vmatprep.subr.mxu0 0.0
  %400 = vmatpush2.xpose.msra.mxu0 0.0
  %401 = vmatprep.subr.mxu0 0.0
  %402 = vmatpush2.xpose.msra.mxu0 0.0
  %403 = vmatprep.subr.mxu0 0.0
  %404 = vmatpush2.xpose.msra.mxu0 0.0
  %405 = vmatprep.subr.mxu0 0.0
  %406 = vmatpush2.xpose.msra.mxu0 0.0
  %407 = vmatprep.subr.mxu0 0.0
  %408 = vmatpush2.xpose.msra.mxu0 0.0
  %409 = vmatprep.mubr.f32.mxu0 %v253
  %410 = vmatmul.mubr.f32.gmra.mxu0 %v252
  %v411 = vpop.f32.mrf.mxu0
  %v412 = vadd.f32 %v337, %v411
  %v413 = vpop.f32.mrf.mxu0
  %414 = vmatprep.mubr.f32.mxu0 %v268
  %415 = vmatmul.mubr.f32.gmra.mxu0 %v267
  %v416 = vpop.f32.mrf.mxu0
  %v417 = vadd.f32 %v342, %v416
  %v418 = vpop.f32.mrf.mxu0
  %419 = vdwg.mxu0
  %420 = vmatprep.subr.mxu0 0.0
  %421 = vmatpush1.xpose.msra.mxu0 0.0
  %422 = vmatprep.subr.mxu0 0.0
  %423 = vmatpush1.xpose.msra.mxu0 0.0
  %424 = vmatprep.subr.mxu0 0.0
  %425 = vmatpush1.xpose.msra.mxu0 0.0
  %426 = vmatprep.subr.mxu0 0.0
  %427 = vmatpush1.xpose.msra.mxu0 0.0
  %428 = vmatprep.subr.mxu0 0.0
  %429 = vmatpush1.xpose.msra.mxu0 0.0
  %430 = vmatprep.subr.mxu0 0.0
  %431 = vmatpush1.xpose.msra.mxu0 0.0
  %432 = vmatprep.subr.mxu0 0.0
  %433 = vmatpush1.xpose.msra.mxu0 0.0
  %434 = vmatprep.subr.mxu0 0.0
  %435 = vmatpush1.xpose.msra.mxu0 0.0
  %436 = vmatprep.subr.mxu0 0.0
  %437 = vmatpush1.xpose.msra.mxu0 0.0
  %438 = vmatprep.subr.mxu0 0.0
  %439 = vmatpush1.xpose.msra.mxu0 0.0
  %440 = vmatprep.subr.mxu0 0.0
  %441 = vmatpush1.xpose.msra.mxu0 0.0
  %442 = vmatprep.subr.mxu0 0.0
  %443 = vmatpush1.xpose.msra.mxu0 0.0
  %444 = vmatprep.subr.mxu0 0.0
  %445 = vmatpush1.xpose.msra.mxu0 0.0
  %446 = vmatprep.subr.mxu0 0.0
  %447 = vmatpush1.xpose.msra.mxu0 0.0
  %448 = vmatprep.subr.mxu0 0.0
  %449 = vmatpush1.xpose.msra.mxu0 0.0
  %450 = vmatprep.subr.mxu0 0.0
  %451 = vmatpush1.xpose.msra.mxu0 %v249
  %452 = vmatprep.subr.mxu0 0.0
  %453 = vmatpush2.xpose.msra.mxu0 0.0
  %454 = vmatprep.subr.mxu0 0.0
  %455 = vmatpush2.xpose.msra.mxu0 0.0
  %456 = vmatprep.subr.mxu0 0.0
  %457 = vmatpush2.xpose.msra.mxu0 0.0
  %458 = vmatprep.subr.mxu0 0.0
  %459 = vmatpush2.xpose.msra.mxu0 0.0
  %460 = vmatprep.subr.mxu0 0.0
  %461 = vmatpush2.xpose.msra.mxu0 0.0
  %462 = vmatprep.subr.mxu0 0.0
  %463 = vmatpush2.xpose.msra.mxu0 0.0
  %464 = vmatprep.subr.mxu0 0.0
  %465 = vmatpush2.xpose.msra.mxu0 0.0
  %466 = vmatprep.subr.mxu0 0.0
  %467 = vmatpush2.xpose.msra.mxu0 0.0
  %468 = vmatprep.subr.mxu0 0.0
  %469 = vmatpush2.xpose.msra.mxu0 0.0
  %470 = vmatprep.subr.mxu0 0.0
  %471 = vmatpush2.xpose.msra.mxu0 0.0
  %472 = vmatprep.subr.mxu0 0.0
  %473 = vmatpush2.xpose.msra.mxu0 0.0
  %474 = vmatprep.subr.mxu0 0.0
  %475 = vmatpush2.xpose.msra.mxu0 0.0
  %476 = vmatprep.subr.mxu0 0.0
  %477 = vmatpush2.xpose.msra.mxu0 0.0
  %478 = vmatprep.subr.mxu0 0.0
  %479 = vmatpush2.xpose.msra.mxu0 0.0
  %480 = vmatprep.subr.mxu0 0.0
  %481 = vmatpush2.xpose.msra.mxu0 0.0
  %482 = vmatprep.subr.mxu0 0.0
  %483 = vmatpush2.xpose.msra.mxu0 0.0
  %484 = vmatprep.mubr.f32.mxu0 0.0
  %485 = vmatmul.mubr.f32.gmra.mxu0 %v254
  %v486 = vpop.f32.mrf.mxu0
  %v487 = vadd.f32 %v412, %v486
  %v488 = vpop.f32.mrf.mxu0
  %489 = vmatprep.mubr.f32.mxu0 0.0
  %490 = vmatmul.mubr.f32.gmra.mxu0 %v269
  %v491 = vpop.f32.mrf.mxu0
  %v492 = vadd.f32 %v417, %v491
  %v493 = vpop.f32.mrf.mxu0
  %494 = vdwg.mxu0
  %v495 = vmul.f32 %v487, 0.00390625
  %v496 = vmul.f32 %v492, 0.00390625
  %v497 = vmul.f32 %v495, %v495
  %v498 = vsub.f32 %v496, %v497
  %v499 = vmax.f32 %v498, 0.0
  %v500 = vld [vmem:[%s2] sm:$0xff]
  %v501 = vadd.f32 %v499, 1e-05
  %v502 = vrsqrt.pop %v501
  %v503 = vmul.f32 %v500, %v502
  %v504 = vld [vmem:[%s3] sm:$0xff]
  %v505 = vmul.f32 %v495, %v503
  %v506 = vsub.f32 %v504, %v505
  %vm507 = vcmask 39936
  %v509 = vsel %vm507, %v503, 0
  %v512 = vsel %vm507, %v506, 0
  %vm514 = vcmask 1044480
  %v516 = vsel %vm514, %v245, 0
  %v519 = vsel %vm514, %v246, 0
  %v522 = vsel %vm514, %v247, 0
  %v525 = vsel %vm514, %v248, 0
  %v528 = vsel %vm514, %v249, 0
  %530 = vmatprep.subr.mxu0 0.0
  %531 = vmatpush1.msra.mxu0 0.0
  %532 = vmatprep.subr.mxu0 0.0
  %533 = vmatpush1.msra.mxu0 0.0
  %534 = vmatprep.subr.mxu0 0.0
  %535 = vmatpush1.msra.mxu0 0.0
  %536 = vmatprep.subr.mxu0 0.0
  %537 = vmatpush1.msra.mxu0 0.0
  %538 = vmatprep.subr.mxu0 0.0
  %539 = vmatpush1.msra.mxu0 0.0
  %540 = vmatprep.subr.mxu0 0.0
  %541 = vmatpush1.msra.mxu0 0.0
  %542 = vmatprep.subr.mxu0 0.0
  %543 = vmatpush1.msra.mxu0 0.0
  %544 = vmatprep.subr.mxu0 0.0
  %545 = vmatpush1.msra.mxu0 0.0
  %546 = vmatprep.subr.mxu0 0.0
  %547 = vmatpush1.msra.mxu0 0.0
  %548 = vmatprep.subr.mxu0 0.0
  %549 = vmatpush1.msra.mxu0 0.0
  %550 = vmatprep.subr.mxu0 0.0
  %551 = vmatpush1.msra.mxu0 0.0
  %552 = vmatprep.subr.mxu0 0.0
  %553 = vmatpush1.msra.mxu0 0.0
  %554 = vmatprep.subr.mxu0 0.0
  %555 = vmatpush1.msra.mxu0 0.0
  %556 = vmatprep.subr.mxu0 0.0
  %557 = vmatpush1.msra.mxu0 0.0
  %558 = vmatprep.subr.mxu0 0.0
  %559 = vmatpush1.msra.mxu0 0.0
  %560 = vmatprep.subr.mxu0 %v519
  %561 = vmatpush1.msra.mxu0 %v516
  %562 = vmatprep.subr.mxu0 0.0
  %563 = vmatpush2.msra.mxu0 0.0
  %564 = vmatprep.subr.mxu0 0.0
  %565 = vmatpush2.msra.mxu0 0.0
  %566 = vmatprep.subr.mxu0 0.0
  %567 = vmatpush2.msra.mxu0 0.0
  %568 = vmatprep.subr.mxu0 0.0
  %569 = vmatpush2.msra.mxu0 0.0
  %570 = vmatprep.subr.mxu0 0.0
  %571 = vmatpush2.msra.mxu0 0.0
  %572 = vmatprep.subr.mxu0 0.0
  %573 = vmatpush2.msra.mxu0 0.0
  %574 = vmatprep.subr.mxu0 0.0
  %575 = vmatpush2.msra.mxu0 0.0
  %576 = vmatprep.subr.mxu0 0.0
  %577 = vmatpush2.msra.mxu0 0.0
  %578 = vmatprep.subr.mxu0 0.0
  %579 = vmatpush2.msra.mxu0 0.0
  %580 = vmatprep.subr.mxu0 0.0
  %581 = vmatpush2.msra.mxu0 0.0
  %582 = vmatprep.subr.mxu0 0.0
  %583 = vmatpush2.msra.mxu0 0.0
  %584 = vmatprep.subr.mxu0 0.0
  %585 = vmatpush2.msra.mxu0 0.0
  %586 = vmatprep.subr.mxu0 0.0
  %587 = vmatpush2.msra.mxu0 0.0
  %588 = vmatprep.subr.mxu0 0.0
  %589 = vmatpush2.msra.mxu0 0.0
  %590 = vmatprep.subr.mxu0 0.0
  %591 = vmatpush2.msra.mxu0 0.0
  %592 = vmatprep.subr.mxu0 0.0
  %593 = vmatpush2.msra.mxu0 0.0
  %594 = vmatprep.mubr.f32.mxu0 0.0
  %595 = vmatmul.mubr.f32.gmra.mxu0 %v509
  %v596 = vpop.f32.mrf.mxu0
  %v597 = vadd.f32 0.0, %v596
  %v598 = vpop.f32.mrf.mxu0
  %v599 = vadd.f32 0.0, %v598
  %600 = vmatprep.mubr.f32.mxu0 0.0
  %601 = vmatmul.mubr.f32.gmra.mxu0 %v512
  %v602 = vpop.f32.mrf.mxu0
  %v603 = vadd.f32 0.0, %v602
  %v604 = vpop.f32.mrf.mxu0
  %v605 = vadd.f32 0.0, %v604
  %606 = vdwg.mxu0
  %607 = vmatprep.subr.mxu0 0.0
  %608 = vmatpush1.msra.mxu0 0.0
  %609 = vmatprep.subr.mxu0 0.0
  %610 = vmatpush1.msra.mxu0 0.0
  %611 = vmatprep.subr.mxu0 0.0
  %612 = vmatpush1.msra.mxu0 0.0
  %613 = vmatprep.subr.mxu0 0.0
  %614 = vmatpush1.msra.mxu0 0.0
  %615 = vmatprep.subr.mxu0 0.0
  %616 = vmatpush1.msra.mxu0 0.0
  %617 = vmatprep.subr.mxu0 0.0
  %618 = vmatpush1.msra.mxu0 0.0
  %619 = vmatprep.subr.mxu0 0.0
  %620 = vmatpush1.msra.mxu0 0.0
  %621 = vmatprep.subr.mxu0 0.0
  %622 = vmatpush1.msra.mxu0 0.0
  %623 = vmatprep.subr.mxu0 0.0
  %624 = vmatpush1.msra.mxu0 0.0
  %625 = vmatprep.subr.mxu0 0.0
  %626 = vmatpush1.msra.mxu0 0.0
  %627 = vmatprep.subr.mxu0 0.0
  %628 = vmatpush1.msra.mxu0 0.0
  %629 = vmatprep.subr.mxu0 0.0
  %630 = vmatpush1.msra.mxu0 0.0
  %631 = vmatprep.subr.mxu0 0.0
  %632 = vmatpush1.msra.mxu0 0.0
  %633 = vmatprep.subr.mxu0 0.0
  %634 = vmatpush1.msra.mxu0 0.0
  %635 = vmatprep.subr.mxu0 0.0
  %636 = vmatpush1.msra.mxu0 0.0
  %637 = vmatprep.subr.mxu0 %v525
  %638 = vmatpush1.msra.mxu0 %v522
  %639 = vmatprep.subr.mxu0 0.0
  %640 = vmatpush2.msra.mxu0 0.0
  %641 = vmatprep.subr.mxu0 0.0
  %642 = vmatpush2.msra.mxu0 0.0
  %643 = vmatprep.subr.mxu0 0.0
  %644 = vmatpush2.msra.mxu0 0.0
  %645 = vmatprep.subr.mxu0 0.0
  %646 = vmatpush2.msra.mxu0 0.0
  %647 = vmatprep.subr.mxu0 0.0
  %648 = vmatpush2.msra.mxu0 0.0
  %649 = vmatprep.subr.mxu0 0.0
  %650 = vmatpush2.msra.mxu0 0.0
  %651 = vmatprep.subr.mxu0 0.0
  %652 = vmatpush2.msra.mxu0 0.0
  %653 = vmatprep.subr.mxu0 0.0
  %654 = vmatpush2.msra.mxu0 0.0
  %655 = vmatprep.subr.mxu0 0.0
  %656 = vmatpush2.msra.mxu0 0.0
  %657 = vmatprep.subr.mxu0 0.0
  %658 = vmatpush2.msra.mxu0 0.0
  %659 = vmatprep.subr.mxu0 0.0
  %660 = vmatpush2.msra.mxu0 0.0
  %661 = vmatprep.subr.mxu0 0.0
  %662 = vmatpush2.msra.mxu0 0.0
  %663 = vmatprep.subr.mxu0 0.0
  %664 = vmatpush2.msra.mxu0 0.0
  %665 = vmatprep.subr.mxu0 0.0
  %666 = vmatpush2.msra.mxu0 0.0
  %667 = vmatprep.subr.mxu0 0.0
  %668 = vmatpush2.msra.mxu0 0.0
  %669 = vmatprep.subr.mxu0 0.0
  %670 = vmatpush2.msra.mxu0 0.0
  %671 = vmatprep.mubr.f32.mxu0 0.0
  %672 = vmatmul.mubr.f32.gmra.mxu0 %v509
  %v673 = vpop.f32.mrf.mxu0
  %v674 = vadd.f32 0.0, %v673
  %v675 = vpop.f32.mrf.mxu0
  %v676 = vadd.f32 0.0, %v675
  %677 = vmatprep.mubr.f32.mxu0 0.0
  %678 = vmatmul.mubr.f32.gmra.mxu0 %v512
  %v679 = vpop.f32.mrf.mxu0
  %v680 = vadd.f32 0.0, %v679
  %v681 = vpop.f32.mrf.mxu0
  %v682 = vadd.f32 0.0, %v681
  %683 = vdwg.mxu0
  %684 = vmatprep.subr.mxu0 0.0
  %685 = vmatpush1.msra.mxu0 0.0
  %686 = vmatprep.subr.mxu0 0.0
  %687 = vmatpush1.msra.mxu0 0.0
  %688 = vmatprep.subr.mxu0 0.0
  %689 = vmatpush1.msra.mxu0 0.0
  %690 = vmatprep.subr.mxu0 0.0
  %691 = vmatpush1.msra.mxu0 0.0
  %692 = vmatprep.subr.mxu0 0.0
  %693 = vmatpush1.msra.mxu0 0.0
  %694 = vmatprep.subr.mxu0 0.0
  %695 = vmatpush1.msra.mxu0 0.0
  %696 = vmatprep.subr.mxu0 0.0
  %697 = vmatpush1.msra.mxu0 0.0
  %698 = vmatprep.subr.mxu0 0.0
  %699 = vmatpush1.msra.mxu0 0.0
  %700 = vmatprep.subr.mxu0 0.0
  %701 = vmatpush1.msra.mxu0 0.0
  %702 = vmatprep.subr.mxu0 0.0
  %703 = vmatpush1.msra.mxu0 0.0
  %704 = vmatprep.subr.mxu0 0.0
  %705 = vmatpush1.msra.mxu0 0.0
  %706 = vmatprep.subr.mxu0 0.0
  %707 = vmatpush1.msra.mxu0 0.0
  %708 = vmatprep.subr.mxu0 0.0
  %709 = vmatpush1.msra.mxu0 0.0
  %710 = vmatprep.subr.mxu0 0.0
  %711 = vmatpush1.msra.mxu0 0.0
  %712 = vmatprep.subr.mxu0 0.0
  %713 = vmatpush1.msra.mxu0 0.0
  %714 = vmatprep.subr.mxu0 0.0
  %715 = vmatpush1.msra.mxu0 %v528
  %716 = vmatprep.subr.mxu0 0.0
  %717 = vmatpush2.msra.mxu0 0.0
  %718 = vmatprep.subr.mxu0 0.0
  %719 = vmatpush2.msra.mxu0 0.0
  %720 = vmatprep.subr.mxu0 0.0
  %721 = vmatpush2.msra.mxu0 0.0
  %722 = vmatprep.subr.mxu0 0.0
  %723 = vmatpush2.msra.mxu0 0.0
  %724 = vmatprep.subr.mxu0 0.0
  %725 = vmatpush2.msra.mxu0 0.0
  %726 = vmatprep.subr.mxu0 0.0
  %727 = vmatpush2.msra.mxu0 0.0
  %728 = vmatprep.subr.mxu0 0.0
  %729 = vmatpush2.msra.mxu0 0.0
  %730 = vmatprep.subr.mxu0 0.0
  %731 = vmatpush2.msra.mxu0 0.0
  %732 = vmatprep.subr.mxu0 0.0
  %733 = vmatpush2.msra.mxu0 0.0
  %734 = vmatprep.subr.mxu0 0.0
  %735 = vmatpush2.msra.mxu0 0.0
  %736 = vmatprep.subr.mxu0 0.0
  %737 = vmatpush2.msra.mxu0 0.0
  %738 = vmatprep.subr.mxu0 0.0
  %739 = vmatpush2.msra.mxu0 0.0
  %740 = vmatprep.subr.mxu0 0.0
  %741 = vmatpush2.msra.mxu0 0.0
  %742 = vmatprep.subr.mxu0 0.0
  %743 = vmatpush2.msra.mxu0 0.0
  %744 = vmatprep.subr.mxu0 0.0
  %745 = vmatpush2.msra.mxu0 0.0
  %746 = vmatprep.subr.mxu0 0.0
  %747 = vmatpush2.msra.mxu0 0.0
  %748 = vmatprep.mubr.f32.mxu0 0.0
  %749 = vmatmul.mubr.f32.gmra.mxu0 %v509
  %v750 = vpop.f32.mrf.mxu0
  %v751 = vadd.f32 0.0, %v750
  %v752 = vpop.f32.mrf.mxu0
  %753 = vmatprep.mubr.f32.mxu0 0.0
  %754 = vmatmul.mubr.f32.gmra.mxu0 %v512
  %v755 = vpop.f32.mrf.mxu0
  %v756 = vadd.f32 0.0, %v755
  %v757 = vpop.f32.mrf.mxu0
  %758 = vdwg.mxu0
  %v759 = vmul.f32 %v211, %v597
  %v760 = vmul.f32 %v212, %v599
  %v761 = vmul.f32 %v213, %v674
  %v762 = vmul.f32 %v214, %v676
  %v763 = vmul.f32 %v215, %v751
  %v764 = vmul.f32 %v216, %v597
  %v765 = vmul.f32 %v217, %v599
  %v766 = vmul.f32 %v218, %v674
  %v767 = vmul.f32 %v219, %v676
  %v768 = vmul.f32 %v220, %v751
  %v769 = vadd.f32 %v759, %v603
  %v770 = vadd.f32 %v760, %v605
  %v771 = vadd.f32 %v761, %v680
  %v772 = vadd.f32 %v762, %v682
  %v773 = vadd.f32 %v763, %v756
  %v774 = vadd.f32 %v764, %v603
  %v775 = vadd.f32 %v765, %v605
  %v776 = vadd.f32 %v766, %v680
  %v777 = vadd.f32 %v767, %v682
  %v778 = vadd.f32 %v768, %v756
  %v779 = vand.u32 %v40, 31
  %v780 = vand.u32 %v41, 31
  %v781 = vand.u32 %v42, 31
  %v782 = vand.u32 %v43, 31
  %v783 = vand.u32 %v44, 31
  %v784 = vadd.s32 %v222, 8
  %v785 = vadd.s32 %v222, 16
  %v786 = vadd.s32 %v222, 24
  %vm787 = vcmp.eq.s32.totalorder %v779, %v222
  %vm788 = vcmp.eq.s32.totalorder %v780, %v222
  %vm789 = vcmp.eq.s32.totalorder %v781, %v222
  %vm790 = vcmp.eq.s32.totalorder %v782, %v222
  %vm791 = vcmp.eq.s32.totalorder %v783, %v222
  %vm792 = vcmp.eq.s32.totalorder %v779, %v784
  %vm793 = vcmp.eq.s32.totalorder %v780, %v784
  %vm794 = vcmp.eq.s32.totalorder %v781, %v784
  %vm795 = vcmp.eq.s32.totalorder %v782, %v784
  %vm796 = vcmp.eq.s32.totalorder %v783, %v784
  %vm797 = vcmp.eq.s32.totalorder %v779, %v785
  %vm798 = vcmp.eq.s32.totalorder %v780, %v785
  %vm799 = vcmp.eq.s32.totalorder %v781, %v785
  %vm800 = vcmp.eq.s32.totalorder %v782, %v785
  %vm801 = vcmp.eq.s32.totalorder %v783, %v785
  %vm802 = vcmp.eq.s32.totalorder %v779, %v786
  %vm803 = vcmp.eq.s32.totalorder %v780, %v786
  %vm804 = vcmp.eq.s32.totalorder %v781, %v786
  %vm805 = vcmp.eq.s32.totalorder %v782, %v786
  %vm806 = vcmp.eq.s32.totalorder %v783, %v786
  %v807 = vsel %vm787, 1, 0
  %v808 = vsel %vm788, 1, 0
  %v809 = vsel %vm789, 1, 0
  %v810 = vsel %vm790, 1, 0
  %v811 = vsel %vm791, 1, 0
  %v812 = vsel %vm792, 1, 0
  %v813 = vsel %vm793, 1, 0
  %v814 = vsel %vm794, 1, 0
  %v815 = vsel %vm795, 1, 0
  %v816 = vsel %vm796, 1, 0
  %v817 = vsel %vm797, 1, 0
  %v818 = vsel %vm798, 1, 0
  %v819 = vsel %vm799, 1, 0
  %v820 = vsel %vm800, 1, 0
  %v821 = vsel %vm801, 1, 0
  %v822 = vsel %vm802, 1, 0
  %v823 = vsel %vm803, 1, 0
  %v824 = vsel %vm804, 1, 0
  %v825 = vsel %vm805, 1, 0
  %v826 = vsel %vm806, 1, 0
  %v827 = vcvt.s32.f32 %v807
  %v828 = vcvt.s32.f32 %v808
  %v829 = vcvt.s32.f32 %v809
  %v830 = vcvt.s32.f32 %v810
  %v831 = vcvt.s32.f32 %v811
  %v832 = vcvt.s32.f32 %v812
  %v833 = vcvt.s32.f32 %v813
  %v834 = vcvt.s32.f32 %v814
  %v835 = vcvt.s32.f32 %v815
  %v836 = vcvt.s32.f32 %v816
  %v837 = vcvt.s32.f32 %v817
  %v838 = vcvt.s32.f32 %v818
  %v839 = vcvt.s32.f32 %v819
  %v840 = vcvt.s32.f32 %v820
  %v841 = vcvt.s32.f32 %v821
  %v842 = vcvt.s32.f32 %v822
  %v843 = vcvt.s32.f32 %v823
  %v844 = vcvt.s32.f32 %v824
  %v845 = vcvt.s32.f32 %v825
  %v846 = vcvt.s32.f32 %v826
  %847 = vmatprep.subr.mxu0 0.0
  %848 = vmatpush1.xpose.msra.mxu0 0.0
  %849 = vmatprep.subr.mxu0 0.0
  %850 = vmatpush1.xpose.msra.mxu0 0.0
  %851 = vmatprep.subr.mxu0 0.0
  %852 = vmatpush1.xpose.msra.mxu0 0.0
  %853 = vmatprep.subr.mxu0 0.0
  %854 = vmatpush1.xpose.msra.mxu0 0.0
  %855 = vmatprep.subr.mxu0 0.0
  %856 = vmatpush1.xpose.msra.mxu0 0.0
  %857 = vmatprep.subr.mxu0 0.0
  %858 = vmatpush1.xpose.msra.mxu0 0.0
  %859 = vmatprep.subr.mxu0 0.0
  %860 = vmatpush1.xpose.msra.mxu0 0.0
  %861 = vmatprep.subr.mxu0 0.0
  %862 = vmatpush1.xpose.msra.mxu0 0.0
  %863 = vmatprep.subr.mxu0 0.0
  %864 = vmatpush1.xpose.msra.mxu0 0.0
  %865 = vmatprep.subr.mxu0 0.0
  %866 = vmatpush1.xpose.msra.mxu0 0.0
  %867 = vmatprep.subr.mxu0 0.0
  %868 = vmatpush1.xpose.msra.mxu0 0.0
  %869 = vmatprep.subr.mxu0 0.0
  %870 = vmatpush1.xpose.msra.mxu0 0.0
  %871 = vmatprep.subr.mxu0 %v843
  %872 = vmatpush1.xpose.msra.mxu0 %v842
  %873 = vmatprep.subr.mxu0 %v838
  %874 = vmatpush1.xpose.msra.mxu0 %v837
  %875 = vmatprep.subr.mxu0 %v833
  %876 = vmatpush1.xpose.msra.mxu0 %v832
  %877 = vmatprep.subr.mxu0 %v828
  %878 = vmatpush1.xpose.msra.mxu0 %v827
  %879 = vmatprep.subr.mxu0 0.0
  %880 = vmatpush2.xpose.msra.mxu0 0.0
  %881 = vmatprep.subr.mxu0 0.0
  %882 = vmatpush2.xpose.msra.mxu0 0.0
  %883 = vmatprep.subr.mxu0 0.0
  %884 = vmatpush2.xpose.msra.mxu0 0.0
  %885 = vmatprep.subr.mxu0 0.0
  %886 = vmatpush2.xpose.msra.mxu0 0.0
  %887 = vmatprep.subr.mxu0 0.0
  %888 = vmatpush2.xpose.msra.mxu0 0.0
  %889 = vmatprep.subr.mxu0 0.0
  %890 = vmatpush2.xpose.msra.mxu0 0.0
  %891 = vmatprep.subr.mxu0 0.0
  %892 = vmatpush2.xpose.msra.mxu0 0.0
  %893 = vmatprep.subr.mxu0 0.0
  %894 = vmatpush2.xpose.msra.mxu0 0.0
  %895 = vmatprep.subr.mxu0 0.0
  %896 = vmatpush2.xpose.msra.mxu0 0.0
  %897 = vmatprep.subr.mxu0 0.0
  %898 = vmatpush2.xpose.msra.mxu0 0.0
  %899 = vmatprep.subr.mxu0 0.0
  %900 = vmatpush2.xpose.msra.mxu0 0.0
  %901 = vmatprep.subr.mxu0 0.0
  %902 = vmatpush2.xpose.msra.mxu0 0.0
  %903 = vmatprep.subr.mxu0 0.0
  %904 = vmatpush2.xpose.msra.mxu0 0.0
  %905 = vmatprep.subr.mxu0 0.0
  %906 = vmatpush2.xpose.msra.mxu0 0.0
  %907 = vmatprep.subr.mxu0 0.0
  %908 = vmatpush2.xpose.msra.mxu0 0.0
  %909 = vmatprep.subr.mxu0 0.0
  %910 = vmatpush2.xpose.msra.mxu0 0.0
  %911 = vmatprep.mubr.f32.mxu0 %v770
  %912 = vmatmul.mubr.f32.gmra.mxu0 %v769
  %v913 = vpop.f32.mrf.mxu0
  %v914 = vadd.f32 0.0, %v913
  %v915 = vpop.f32.mrf.mxu0
  %916 = vmatprep.mubr.f32.mxu0 %v775
  %917 = vmatmul.mubr.f32.gmra.mxu0 %v774
  %v918 = vpop.f32.mrf.mxu0
  %v919 = vadd.f32 0.0, %v918
  %v920 = vpop.f32.mrf.mxu0
  %921 = vdwg.mxu0
  %922 = vmatprep.subr.mxu0 0.0
  %923 = vmatpush1.xpose.msra.mxu0 0.0
  %924 = vmatprep.subr.mxu0 0.0
  %925 = vmatpush1.xpose.msra.mxu0 0.0
  %926 = vmatprep.subr.mxu0 0.0
  %927 = vmatpush1.xpose.msra.mxu0 0.0
  %928 = vmatprep.subr.mxu0 0.0
  %929 = vmatpush1.xpose.msra.mxu0 0.0
  %930 = vmatprep.subr.mxu0 0.0
  %931 = vmatpush1.xpose.msra.mxu0 0.0
  %932 = vmatprep.subr.mxu0 0.0
  %933 = vmatpush1.xpose.msra.mxu0 0.0
  %934 = vmatprep.subr.mxu0 0.0
  %935 = vmatpush1.xpose.msra.mxu0 0.0
  %936 = vmatprep.subr.mxu0 0.0
  %937 = vmatpush1.xpose.msra.mxu0 0.0
  %938 = vmatprep.subr.mxu0 0.0
  %939 = vmatpush1.xpose.msra.mxu0 0.0
  %940 = vmatprep.subr.mxu0 0.0
  %941 = vmatpush1.xpose.msra.mxu0 0.0
  %942 = vmatprep.subr.mxu0 0.0
  %943 = vmatpush1.xpose.msra.mxu0 0.0
  %944 = vmatprep.subr.mxu0 0.0
  %945 = vmatpush1.xpose.msra.mxu0 0.0
  %946 = vmatprep.subr.mxu0 %v845
  %947 = vmatpush1.xpose.msra.mxu0 %v844
  %948 = vmatprep.subr.mxu0 %v840
  %949 = vmatpush1.xpose.msra.mxu0 %v839
  %950 = vmatprep.subr.mxu0 %v835
  %951 = vmatpush1.xpose.msra.mxu0 %v834
  %952 = vmatprep.subr.mxu0 %v830
  %953 = vmatpush1.xpose.msra.mxu0 %v829
  %954 = vmatprep.subr.mxu0 0.0
  %955 = vmatpush2.xpose.msra.mxu0 0.0
  %956 = vmatprep.subr.mxu0 0.0
  %957 = vmatpush2.xpose.msra.mxu0 0.0
  %958 = vmatprep.subr.mxu0 0.0
  %959 = vmatpush2.xpose.msra.mxu0 0.0
  %960 = vmatprep.subr.mxu0 0.0
  %961 = vmatpush2.xpose.msra.mxu0 0.0
  %962 = vmatprep.subr.mxu0 0.0
  %963 = vmatpush2.xpose.msra.mxu0 0.0
  %964 = vmatprep.subr.mxu0 0.0
  %965 = vmatpush2.xpose.msra.mxu0 0.0
  %966 = vmatprep.subr.mxu0 0.0
  %967 = vmatpush2.xpose.msra.mxu0 0.0
  %968 = vmatprep.subr.mxu0 0.0
  %969 = vmatpush2.xpose.msra.mxu0 0.0
  %970 = vmatprep.subr.mxu0 0.0
  %971 = vmatpush2.xpose.msra.mxu0 0.0
  %972 = vmatprep.subr.mxu0 0.0
  %973 = vmatpush2.xpose.msra.mxu0 0.0
  %974 = vmatprep.subr.mxu0 0.0
  %975 = vmatpush2.xpose.msra.mxu0 0.0
  %976 = vmatprep.subr.mxu0 0.0
  %977 = vmatpush2.xpose.msra.mxu0 0.0
  %978 = vmatprep.subr.mxu0 0.0
  %979 = vmatpush2.xpose.msra.mxu0 0.0
  %980 = vmatprep.subr.mxu0 0.0
  %981 = vmatpush2.xpose.msra.mxu0 0.0
  %982 = vmatprep.subr.mxu0 0.0
  %983 = vmatpush2.xpose.msra.mxu0 0.0
  %984 = vmatprep.subr.mxu0 0.0
  %985 = vmatpush2.xpose.msra.mxu0 0.0
  %986 = vmatprep.mubr.f32.mxu0 %v772
  %987 = vmatmul.mubr.f32.gmra.mxu0 %v771
  %v988 = vpop.f32.mrf.mxu0
  %v989 = vadd.f32 %v914, %v988
  %v990 = vpop.f32.mrf.mxu0
  %991 = vmatprep.mubr.f32.mxu0 %v777
  %992 = vmatmul.mubr.f32.gmra.mxu0 %v776
  %v993 = vpop.f32.mrf.mxu0
  %v994 = vadd.f32 %v919, %v993
  %v995 = vpop.f32.mrf.mxu0
  %996 = vdwg.mxu0
  %997 = vmatprep.subr.mxu0 0.0
  %998 = vmatpush1.xpose.msra.mxu0 0.0
  %999 = vmatprep.subr.mxu0 0.0
  %1000 = vmatpush1.xpose.msra.mxu0 0.0
  %1001 = vmatprep.subr.mxu0 0.0
  %1002 = vmatpush1.xpose.msra.mxu0 0.0
  %1003 = vmatprep.subr.mxu0 0.0
  %1004 = vmatpush1.xpose.msra.mxu0 0.0
  %1005 = vmatprep.subr.mxu0 0.0
  %1006 = vmatpush1.xpose.msra.mxu0 0.0
  %1007 = vmatprep.subr.mxu0 0.0
  %1008 = vmatpush1.xpose.msra.mxu0 0.0
  %1009 = vmatprep.subr.mxu0 0.0
  %1010 = vmatpush1.xpose.msra.mxu0 0.0
  %1011 = vmatprep.subr.mxu0 0.0
  %1012 = vmatpush1.xpose.msra.mxu0 0.0
  %1013 = vmatprep.subr.mxu0 0.0
  %1014 = vmatpush1.xpose.msra.mxu0 0.0
  %1015 = vmatprep.subr.mxu0 0.0
  %1016 = vmatpush1.xpose.msra.mxu0 0.0
  %1017 = vmatprep.subr.mxu0 0.0
  %1018 = vmatpush1.xpose.msra.mxu0 0.0
  %1019 = vmatprep.subr.mxu0 0.0
  %1020 = vmatpush1.xpose.msra.mxu0 0.0
  %1021 = vmatprep.subr.mxu0 0.0
  %1022 = vmatpush1.xpose.msra.mxu0 %v846
  %1023 = vmatprep.subr.mxu0 0.0
  %1024 = vmatpush1.xpose.msra.mxu0 %v841
  %1025 = vmatprep.subr.mxu0 0.0
  %1026 = vmatpush1.xpose.msra.mxu0 %v836
  %1027 = vmatprep.subr.mxu0 0.0
  %1028 = vmatpush1.xpose.msra.mxu0 %v831
  %1029 = vmatprep.subr.mxu0 0.0
  %1030 = vmatpush2.xpose.msra.mxu0 0.0
  %1031 = vmatprep.subr.mxu0 0.0
  %1032 = vmatpush2.xpose.msra.mxu0 0.0
  %1033 = vmatprep.subr.mxu0 0.0
  %1034 = vmatpush2.xpose.msra.mxu0 0.0
  %1035 = vmatprep.subr.mxu0 0.0
  %1036 = vmatpush2.xpose.msra.mxu0 0.0
  %1037 = vmatprep.subr.mxu0 0.0
  %1038 = vmatpush2.xpose.msra.mxu0 0.0
  %1039 = vmatprep.subr.mxu0 0.0
  %1040 = vmatpush2.xpose.msra.mxu0 0.0
  %1041 = vmatprep.subr.mxu0 0.0
  %1042 = vmatpush2.xpose.msra.mxu0 0.0
  %1043 = vmatprep.subr.mxu0 0.0
  %1044 = vmatpush2.xpose.msra.mxu0 0.0
  %1045 = vmatprep.subr.mxu0 0.0
  %1046 = vmatpush2.xpose.msra.mxu0 0.0
  %1047 = vmatprep.subr.mxu0 0.0
  %1048 = vmatpush2.xpose.msra.mxu0 0.0
  %1049 = vmatprep.subr.mxu0 0.0
  %1050 = vmatpush2.xpose.msra.mxu0 0.0
  %1051 = vmatprep.subr.mxu0 0.0
  %1052 = vmatpush2.xpose.msra.mxu0 0.0
  %1053 = vmatprep.subr.mxu0 0.0
  %1054 = vmatpush2.xpose.msra.mxu0 0.0
  %1055 = vmatprep.subr.mxu0 0.0
  %1056 = vmatpush2.xpose.msra.mxu0 0.0
  %1057 = vmatprep.subr.mxu0 0.0
  %1058 = vmatpush2.xpose.msra.mxu0 0.0
  %1059 = vmatprep.subr.mxu0 0.0
  %1060 = vmatpush2.xpose.msra.mxu0 0.0
  %1061 = vmatprep.mubr.f32.mxu0 0.0
  %1062 = vmatmul.mubr.f32.gmra.mxu0 %v773
  %v1063 = vpop.f32.mrf.mxu0
  %v1064 = vadd.f32 %v989, %v1063
  %v1065 = vpop.f32.mrf.mxu0
  %1066 = vmatprep.mubr.f32.mxu0 0.0
  %1067 = vmatmul.mubr.f32.gmra.mxu0 %v778
  %v1068 = vpop.f32.mrf.mxu0
  %v1069 = vadd.f32 %v994, %v1068
  %v1070 = vpop.f32.mrf.mxu0
  %1071 = vdwg.mxu0
  %v1072 = vmul.f32 %v1064, 0.05
  %v1073 = vmul.f32 %v1069, 0.05
  %v1074 = vld [vmem:[%s4] sm:$0xff]
  %1076 = vset.pattern.permute.xlu0 1
  %1077 = vperm.xlu0 %1076, %v1074
  %v1078 = vpop.permute.xlu0 %1077
  %v1080 = vmul.f32 %v1078, %v1072
  %v1081 = vmul.f32 %v1078, %v1073
  %vm1082 = vcmp.ge.s32.totalorder %v40, 1
  %vm1083 = vcmask 1047808
  %1084 = vrot.lane.b32.xlu0 %v1072, 32
  %v1085 = vpop.permute.xlu0 %1084
  %v1086 = vsel %vm1083, %v1085, %v1072
  %1087 = vrot.lane.b32.xlu0 %v1073, 32
  %v1088 = vpop.permute.xlu0 %1087
  %v1089 = vsel %vm1083, %v1088, %v1073
  %1090 = vrot.lane.b32.xlu0 %v1086, 32
  %v1091 = vpop.permute.xlu0 %1090
  %1092 = vrot.lane.b32.xlu0 %v1089, 32
  %v1093 = vpop.permute.xlu0 %1092
  %v1094 = vsel %vm1083, %v1091, %v1072
  %v1095 = vsel %vm1083, %v1093, %v1073
  %v1096 = vsel %vm1082, 1, 0
  %vm1097 = vcmp.eq.s32.totalorder %v1096, 1
  %1100 = vrot.lane.b32.xlu0 %v1094, 97
  %v1101 = vpop.permute.xlu0 %1100
  %1102 = vrot.lane.b32.xlu0 %v1095, 97
  %v1103 = vpop.permute.xlu0 %1102
  %v1106 = vsel %vm1097, %v1101, 0.0
  %v1107 = vsel %vm1097, %v1103, 0.0
  %1108 = vset.pattern.permute.xlu0 0
  %1109 = vperm.xlu0 %1108, %v1074
  %v1110 = vpop.permute.xlu0 %1109
  %v1112 = vmul.f32 %v1110, %v1106
  %v1113 = vmul.f32 %v1110, %v1107
  %v1114 = vadd.f32 %v1080, %v1112
  %v1115 = vadd.f32 %v1081, %v1113
  %vm1116 = vcmp.lt.s32.totalorder %v40, 31
  %v1117 = vsel %vm1116, 1, 0
  %vm1118 = vcmp.eq.s32.totalorder %v1117, 1
  %1119 = vrot.lane.b32.xlu0 %v1094, 127
  %v1120 = vpop.permute.xlu0 %1119
  %1121 = vrot.lane.b32.xlu0 %v1095, 127
  %v1122 = vpop.permute.xlu0 %1121
  %v1125 = vsel %vm1118, %v1120, 0.0
  %v1126 = vsel %vm1118, %v1122, 0.0
  %1127 = vset.pattern.permute.xlu0 2
  %1128 = vperm.xlu0 %1127, %v1074
  %v1129 = vpop.permute.xlu0 %1128
  %v1131 = vmul.f32 %v1129, %v1125
  %v1132 = vmul.f32 %v1129, %v1126
  %v1133 = vadd.f32 %v1114, %v1131
  %v1134 = vadd.f32 %v1115, %v1132
  %vm1135 = vcmask 261120
  %v1136 = vsel %vm1135, %v1133, 0.0
  %1137 = vadd.xlane.f32.xlu0 %v1136
  %v1138 = vpop.xlane.xlu0 %1137
  %v1139 = vsel %vm1135, %v1134, 0.0
  %1140 = vadd.xlane.f32.xlu0 %v1139
  %v1141 = vpop.xlane.xlu0 %1140
  %v1142 = vadd.f32 %v1138, %v1141
  %v1143 = vrcp.pop 64.0
  %v1144 = vmul.f32 %v1142, %v1143
  %v1145 = vmul.f32 %v1133, %v1133
  %v1146 = vmul.f32 %v1134, %v1134
  %v1147 = vsel %vm1135, %v1145, 0.0
  %1148 = vadd.xlane.f32.xlu0 %v1147
  %v1149 = vpop.xlane.xlu0 %1148
  %v1150 = vsel %vm1135, %v1146, 0.0
  %1151 = vadd.xlane.f32.xlu0 %v1150
  %v1152 = vpop.xlane.xlu0 %1151
  %v1153 = vadd.f32 %v1149, %v1152
  %v1154 = vmul.f32 %v1153, %v1143
  %v1155 = vmul.f32 %v1144, %v1144
  %v1156 = vsub.f32 %v1154, %v1155
  %v1157 = vmax.f32 %v1156, 0.0
  %v1158 = vld [vmem:[%s5] sm:$0xff]
  %v1159 = vadd.f32 %v1157, 1e-05
  %v1160 = vrsqrt.pop %v1159
  %v1161 = vmul.f32 %v1158, %v1160
  %v1162 = vld [vmem:[%s6] sm:$0xff]
  %v1163 = vmul.f32 %v1144, %v1161
  %v1164 = vsub.f32 %v1162, %v1163
  %1166 = vset.pattern.permute.xlu0 0
  %1167 = vperm.xlu0 %1166, %v1161
  %v1168 = vpop.permute.xlu0 %1167
  %v1170 = vmul.f32 %v1133, %v1168
  %v1171 = vmul.f32 %v1134, %v1168
  %1173 = vset.pattern.permute.xlu0 0
  %1174 = vperm.xlu0 %1173, %v1164
  %v1175 = vpop.permute.xlu0 %1174
  %v1177 = vadd.f32 %v1170, %v1175
  %v1178 = vadd.f32 %v1171, %v1175
  %v1179 = vmax.f32 %v1177, 0.0
  %v1180 = vmax.f32 %v1178, 0.0
  %v1181 = vld [vmem:[%s7] sm:$0xff]
  %vm1182 = vcmask 64512
  %v1184 = vsel %vm1182, %v1181, 0
  %1186 = vmatprep.subr.mxu0 0.0
  %1187 = vmatpush1.msra.mxu0 0.0
  %1188 = vmatprep.subr.mxu0 0.0
  %1189 = vmatpush1.msra.mxu0 0.0
  %1190 = vmatprep.subr.mxu0 0.0
  %1191 = vmatpush1.msra.mxu0 0.0
  %1192 = vmatprep.subr.mxu0 0.0
  %1193 = vmatpush1.msra.mxu0 0.0
  %1194 = vmatprep.subr.mxu0 0.0
  %1195 = vmatpush1.msra.mxu0 0.0
  %1196 = vmatprep.subr.mxu0 0.0
  %1197 = vmatpush1.msra.mxu0 0.0
  %1198 = vmatprep.subr.mxu0 0.0
  %1199 = vmatpush1.msra.mxu0 0.0
  %1200 = vmatprep.subr.mxu0 0.0
  %1201 = vmatpush1.msra.mxu0 0.0
  %1202 = vmatprep.subr.mxu0 0.0
  %1203 = vmatpush1.msra.mxu0 0.0
  %1204 = vmatprep.subr.mxu0 0.0
  %1205 = vmatpush1.msra.mxu0 0.0
  %1206 = vmatprep.subr.mxu0 0.0
  %1207 = vmatpush1.msra.mxu0 0.0
  %1208 = vmatprep.subr.mxu0 0.0
  %1209 = vmatpush1.msra.mxu0 0.0
  %1210 = vmatprep.subr.mxu0 0.0
  %1211 = vmatpush1.msra.mxu0 0.0
  %1212 = vmatprep.subr.mxu0 0.0
  %1213 = vmatpush1.msra.mxu0 0.0
  %1214 = vmatprep.subr.mxu0 0.0
  %1215 = vmatpush1.msra.mxu0 0.0
  %1216 = vmatprep.subr.mxu0 0.0
  %1217 = vmatpush1.msra.mxu0 %v1179
  %1218 = vmatprep.subr.mxu0 0.0
  %1219 = vmatpush2.msra.mxu0 0.0
  %1220 = vmatprep.subr.mxu0 0.0
  %1221 = vmatpush2.msra.mxu0 0.0
  %1222 = vmatprep.subr.mxu0 0.0
  %1223 = vmatpush2.msra.mxu0 0.0
  %1224 = vmatprep.subr.mxu0 0.0
  %1225 = vmatpush2.msra.mxu0 0.0
  %1226 = vmatprep.subr.mxu0 0.0
  %1227 = vmatpush2.msra.mxu0 0.0
  %1228 = vmatprep.subr.mxu0 0.0
  %1229 = vmatpush2.msra.mxu0 0.0
  %1230 = vmatprep.subr.mxu0 0.0
  %1231 = vmatpush2.msra.mxu0 0.0
  %1232 = vmatprep.subr.mxu0 0.0
  %1233 = vmatpush2.msra.mxu0 0.0
  %1234 = vmatprep.subr.mxu0 0.0
  %1235 = vmatpush2.msra.mxu0 0.0
  %1236 = vmatprep.subr.mxu0 0.0
  %1237 = vmatpush2.msra.mxu0 0.0
  %1238 = vmatprep.subr.mxu0 0.0
  %1239 = vmatpush2.msra.mxu0 0.0
  %1240 = vmatprep.subr.mxu0 0.0
  %1241 = vmatpush2.msra.mxu0 0.0
  %1242 = vmatprep.subr.mxu0 0.0
  %1243 = vmatpush2.msra.mxu0 0.0
  %1244 = vmatprep.subr.mxu0 0.0
  %1245 = vmatpush2.msra.mxu0 0.0
  %1246 = vmatprep.subr.mxu0 0.0
  %1247 = vmatpush2.msra.mxu0 0.0
  %1248 = vmatprep.subr.mxu0 0.0
  %1249 = vmatpush2.msra.mxu0 0.0
  %1250 = vmatprep.mubr.f32.mxu0 0.0
  %1251 = vmatmul.mubr.f32.gmra.mxu0 %v1184
  %v1252 = vpop.f32.mrf.mxu0
  %v1253 = vadd.f32 0.0, %v1252
  %v1254 = vpop.f32.mrf.mxu0
  %1255 = vdwg.mxu0
  %1256 = vmatprep.subr.mxu0 0.0
  %1257 = vmatpush1.msra.mxu0 0.0
  %1258 = vmatprep.subr.mxu0 0.0
  %1259 = vmatpush1.msra.mxu0 0.0
  %1260 = vmatprep.subr.mxu0 0.0
  %1261 = vmatpush1.msra.mxu0 0.0
  %1262 = vmatprep.subr.mxu0 0.0
  %1263 = vmatpush1.msra.mxu0 0.0
  %1264 = vmatprep.subr.mxu0 0.0
  %1265 = vmatpush1.msra.mxu0 0.0
  %1266 = vmatprep.subr.mxu0 0.0
  %1267 = vmatpush1.msra.mxu0 0.0
  %1268 = vmatprep.subr.mxu0 0.0
  %1269 = vmatpush1.msra.mxu0 0.0
  %1270 = vmatprep.subr.mxu0 0.0
  %1271 = vmatpush1.msra.mxu0 0.0
  %1272 = vmatprep.subr.mxu0 0.0
  %1273 = vmatpush1.msra.mxu0 0.0
  %1274 = vmatprep.subr.mxu0 0.0
  %1275 = vmatpush1.msra.mxu0 0.0
  %1276 = vmatprep.subr.mxu0 0.0
  %1277 = vmatpush1.msra.mxu0 0.0
  %1278 = vmatprep.subr.mxu0 0.0
  %1279 = vmatpush1.msra.mxu0 0.0
  %1280 = vmatprep.subr.mxu0 0.0
  %1281 = vmatpush1.msra.mxu0 0.0
  %1282 = vmatprep.subr.mxu0 0.0
  %1283 = vmatpush1.msra.mxu0 0.0
  %1284 = vmatprep.subr.mxu0 0.0
  %1285 = vmatpush1.msra.mxu0 0.0
  %1286 = vmatprep.subr.mxu0 0.0
  %1287 = vmatpush1.msra.mxu0 %v1180
  %1288 = vmatprep.subr.mxu0 0.0
  %1289 = vmatpush2.msra.mxu0 0.0
  %1290 = vmatprep.subr.mxu0 0.0
  %1291 = vmatpush2.msra.mxu0 0.0
  %1292 = vmatprep.subr.mxu0 0.0
  %1293 = vmatpush2.msra.mxu0 0.0
  %1294 = vmatprep.subr.mxu0 0.0
  %1295 = vmatpush2.msra.mxu0 0.0
  %1296 = vmatprep.subr.mxu0 0.0
  %1297 = vmatpush2.msra.mxu0 0.0
  %1298 = vmatprep.subr.mxu0 0.0
  %1299 = vmatpush2.msra.mxu0 0.0
  %1300 = vmatprep.subr.mxu0 0.0
  %1301 = vmatpush2.msra.mxu0 0.0
  %1302 = vmatprep.subr.mxu0 0.0
  %1303 = vmatpush2.msra.mxu0 0.0
  %1304 = vmatprep.subr.mxu0 0.0
  %1305 = vmatpush2.msra.mxu0 0.0
  %1306 = vmatprep.subr.mxu0 0.0
  %1307 = vmatpush2.msra.mxu0 0.0
  %1308 = vmatprep.subr.mxu0 0.0
  %1309 = vmatpush2.msra.mxu0 0.0
  %1310 = vmatprep.subr.mxu0 0.0
  %1311 = vmatpush2.msra.mxu0 0.0
  %1312 = vmatprep.subr.mxu0 0.0
  %1313 = vmatpush2.msra.mxu0 0.0
  %1314 = vmatprep.subr.mxu0 0.0
  %1315 = vmatpush2.msra.mxu0 0.0
  %1316 = vmatprep.subr.mxu0 0.0
  %1317 = vmatpush2.msra.mxu0 0.0
  %1318 = vmatprep.subr.mxu0 0.0
  %1319 = vmatpush2.msra.mxu0 0.0
  %1320 = vmatprep.mubr.f32.mxu0 0.0
  %1321 = vmatmul.mubr.f32.gmra.mxu0 %v1184
  %v1322 = vpop.f32.mrf.mxu0
  %v1323 = vadd.f32 0.0, %v1322
  %v1324 = vpop.f32.mrf.mxu0
  %1325 = vdwg.mxu0
  %v1327 = vsel %vm1135, %v1253, 0
  %v1330 = vsel %vm1135, %v1323, 0
  %1332 = vmatprep.subr.mxu0 0.0
  %1333 = vmatpush1.msra.mxu0 0.0
  %1334 = vmatprep.subr.mxu0 0.0
  %1335 = vmatpush1.msra.mxu0 0.0
  %1336 = vmatprep.subr.mxu0 0.0
  %1337 = vmatpush1.msra.mxu0 0.0
  %1338 = vmatprep.subr.mxu0 0.0
  %1339 = vmatpush1.msra.mxu0 0.0
  %1340 = vmatprep.subr.mxu0 0.0
  %1341 = vmatpush1.msra.mxu0 0.0
  %1342 = vmatprep.subr.mxu0 0.0
  %1343 = vmatpush1.msra.mxu0 0.0
  %1344 = vmatprep.subr.mxu0 0.0
  %1345 = vmatpush1.msra.mxu0 0.0
  %1346 = vmatprep.subr.mxu0 0.0
  %1347 = vmatpush1.msra.mxu0 0.0
  %1348 = vmatprep.subr.mxu0 0.0
  %1349 = vmatpush1.msra.mxu0 0.0
  %1350 = vmatprep.subr.mxu0 0.0
  %1351 = vmatpush1.msra.mxu0 0.0
  %1352 = vmatprep.subr.mxu0 0.0
  %1353 = vmatpush1.msra.mxu0 0.0
  %1354 = vmatprep.subr.mxu0 0.0
  %1355 = vmatpush1.msra.mxu0 0.0
  %1356 = vmatprep.subr.mxu0 %v843
  %1357 = vmatpush1.msra.mxu0 %v842
  %1358 = vmatprep.subr.mxu0 %v838
  %1359 = vmatpush1.msra.mxu0 %v837
  %1360 = vmatprep.subr.mxu0 %v833
  %1361 = vmatpush1.msra.mxu0 %v832
  %1362 = vmatprep.subr.mxu0 %v828
  %1363 = vmatpush1.msra.mxu0 %v827
  %1364 = vmatprep.subr.mxu0 0.0
  %1365 = vmatpush2.msra.mxu0 0.0
  %1366 = vmatprep.subr.mxu0 0.0
  %1367 = vmatpush2.msra.mxu0 0.0
  %1368 = vmatprep.subr.mxu0 0.0
  %1369 = vmatpush2.msra.mxu0 0.0
  %1370 = vmatprep.subr.mxu0 0.0
  %1371 = vmatpush2.msra.mxu0 0.0
  %1372 = vmatprep.subr.mxu0 0.0
  %1373 = vmatpush2.msra.mxu0 0.0
  %1374 = vmatprep.subr.mxu0 0.0
  %1375 = vmatpush2.msra.mxu0 0.0
  %1376 = vmatprep.subr.mxu0 0.0
  %1377 = vmatpush2.msra.mxu0 0.0
  %1378 = vmatprep.subr.mxu0 0.0
  %1379 = vmatpush2.msra.mxu0 0.0
  %1380 = vmatprep.subr.mxu0 0.0
  %1381 = vmatpush2.msra.mxu0 0.0
  %1382 = vmatprep.subr.mxu0 0.0
  %1383 = vmatpush2.msra.mxu0 0.0
  %1384 = vmatprep.subr.mxu0 0.0
  %1385 = vmatpush2.msra.mxu0 0.0
  %1386 = vmatprep.subr.mxu0 0.0
  %1387 = vmatpush2.msra.mxu0 0.0
  %1388 = vmatprep.subr.mxu0 0.0
  %1389 = vmatpush2.msra.mxu0 0.0
  %1390 = vmatprep.subr.mxu0 0.0
  %1391 = vmatpush2.msra.mxu0 0.0
  %1392 = vmatprep.subr.mxu0 0.0
  %1393 = vmatpush2.msra.mxu0 0.0
  %1394 = vmatprep.subr.mxu0 0.0
  %1395 = vmatpush2.msra.mxu0 0.0
  %1396 = vmatprep.mubr.f32.mxu0 0.0
  %1397 = vmatmul.mubr.f32.gmra.mxu0 %v1327
  %v1398 = vpop.f32.mrf.mxu0
  %v1399 = vadd.f32 0.0, %v1398
  %v1400 = vpop.f32.mrf.mxu0
  %v1401 = vadd.f32 0.0, %v1400
  %1402 = vmatprep.mubr.f32.mxu0 0.0
  %1403 = vmatmul.mubr.f32.gmra.mxu0 %v1330
  %v1404 = vpop.f32.mrf.mxu0
  %v1405 = vadd.f32 0.0, %v1404
  %v1406 = vpop.f32.mrf.mxu0
  %v1407 = vadd.f32 0.0, %v1406
  %1408 = vdwg.mxu0
  %1409 = vmatprep.subr.mxu0 0.0
  %1410 = vmatpush1.msra.mxu0 0.0
  %1411 = vmatprep.subr.mxu0 0.0
  %1412 = vmatpush1.msra.mxu0 0.0
  %1413 = vmatprep.subr.mxu0 0.0
  %1414 = vmatpush1.msra.mxu0 0.0
  %1415 = vmatprep.subr.mxu0 0.0
  %1416 = vmatpush1.msra.mxu0 0.0
  %1417 = vmatprep.subr.mxu0 0.0
  %1418 = vmatpush1.msra.mxu0 0.0
  %1419 = vmatprep.subr.mxu0 0.0
  %1420 = vmatpush1.msra.mxu0 0.0
  %1421 = vmatprep.subr.mxu0 0.0
  %1422 = vmatpush1.msra.mxu0 0.0
  %1423 = vmatprep.subr.mxu0 0.0
  %1424 = vmatpush1.msra.mxu0 0.0
  %1425 = vmatprep.subr.mxu0 0.0
  %1426 = vmatpush1.msra.mxu0 0.0
  %1427 = vmatprep.subr.mxu0 0.0
  %1428 = vmatpush1.msra.mxu0 0.0
  %1429 = vmatprep.subr.mxu0 0.0
  %1430 = vmatpush1.msra.mxu0 0.0
  %1431 = vmatprep.subr.mxu0 0.0
  %1432 = vmatpush1.msra.mxu0 0.0
  %1433 = vmatprep.subr.mxu0 %v845
  %1434 = vmatpush1.msra.mxu0 %v844
  %1435 = vmatprep.subr.mxu0 %v840
  %1436 = vmatpush1.msra.mxu0 %v839
  %1437 = vmatprep.subr.mxu0 %v835
  %1438 = vmatpush1.msra.mxu0 %v834
  %1439 = vmatprep.subr.mxu0 %v830
  %1440 = vmatpush1.msra.mxu0 %v829
  %1441 = vmatprep.subr.mxu0 0.0
  %1442 = vmatpush2.msra.mxu0 0.0
  %1443 = vmatprep.subr.mxu0 0.0
  %1444 = vmatpush2.msra.mxu0 0.0
  %1445 = vmatprep.subr.mxu0 0.0
  %1446 = vmatpush2.msra.mxu0 0.0
  %1447 = vmatprep.subr.mxu0 0.0
  %1448 = vmatpush2.msra.mxu0 0.0
  %1449 = vmatprep.subr.mxu0 0.0
  %1450 = vmatpush2.msra.mxu0 0.0
  %1451 = vmatprep.subr.mxu0 0.0
  %1452 = vmatpush2.msra.mxu0 0.0
  %1453 = vmatprep.subr.mxu0 0.0
  %1454 = vmatpush2.msra.mxu0 0.0
  %1455 = vmatprep.subr.mxu0 0.0
  %1456 = vmatpush2.msra.mxu0 0.0
  %1457 = vmatprep.subr.mxu0 0.0
  %1458 = vmatpush2.msra.mxu0 0.0
  %1459 = vmatprep.subr.mxu0 0.0
  %1460 = vmatpush2.msra.mxu0 0.0
  %1461 = vmatprep.subr.mxu0 0.0
  %1462 = vmatpush2.msra.mxu0 0.0
  %1463 = vmatprep.subr.mxu0 0.0
  %1464 = vmatpush2.msra.mxu0 0.0
  %1465 = vmatprep.subr.mxu0 0.0
  %1466 = vmatpush2.msra.mxu0 0.0
  %1467 = vmatprep.subr.mxu0 0.0
  %1468 = vmatpush2.msra.mxu0 0.0
  %1469 = vmatprep.subr.mxu0 0.0
  %1470 = vmatpush2.msra.mxu0 0.0
  %1471 = vmatprep.subr.mxu0 0.0
  %1472 = vmatpush2.msra.mxu0 0.0
  %1473 = vmatprep.mubr.f32.mxu0 0.0
  %1474 = vmatmul.mubr.f32.gmra.mxu0 %v1327
  %v1475 = vpop.f32.mrf.mxu0
  %v1476 = vadd.f32 0.0, %v1475
  %v1477 = vpop.f32.mrf.mxu0
  %v1478 = vadd.f32 0.0, %v1477
  %1479 = vmatprep.mubr.f32.mxu0 0.0
  %1480 = vmatmul.mubr.f32.gmra.mxu0 %v1330
  %v1481 = vpop.f32.mrf.mxu0
  %v1482 = vadd.f32 0.0, %v1481
  %v1483 = vpop.f32.mrf.mxu0
  %v1484 = vadd.f32 0.0, %v1483
  %1485 = vdwg.mxu0
  %1486 = vmatprep.subr.mxu0 0.0
  %1487 = vmatpush1.msra.mxu0 0.0
  %1488 = vmatprep.subr.mxu0 0.0
  %1489 = vmatpush1.msra.mxu0 0.0
  %1490 = vmatprep.subr.mxu0 0.0
  %1491 = vmatpush1.msra.mxu0 0.0
  %1492 = vmatprep.subr.mxu0 0.0
  %1493 = vmatpush1.msra.mxu0 0.0
  %1494 = vmatprep.subr.mxu0 0.0
  %1495 = vmatpush1.msra.mxu0 0.0
  %1496 = vmatprep.subr.mxu0 0.0
  %1497 = vmatpush1.msra.mxu0 0.0
  %1498 = vmatprep.subr.mxu0 0.0
  %1499 = vmatpush1.msra.mxu0 0.0
  %1500 = vmatprep.subr.mxu0 0.0
  %1501 = vmatpush1.msra.mxu0 0.0
  %1502 = vmatprep.subr.mxu0 0.0
  %1503 = vmatpush1.msra.mxu0 0.0
  %1504 = vmatprep.subr.mxu0 0.0
  %1505 = vmatpush1.msra.mxu0 0.0
  %1506 = vmatprep.subr.mxu0 0.0
  %1507 = vmatpush1.msra.mxu0 0.0
  %1508 = vmatprep.subr.mxu0 0.0
  %1509 = vmatpush1.msra.mxu0 0.0
  %1510 = vmatprep.subr.mxu0 0.0
  %1511 = vmatpush1.msra.mxu0 %v846
  %1512 = vmatprep.subr.mxu0 0.0
  %1513 = vmatpush1.msra.mxu0 %v841
  %1514 = vmatprep.subr.mxu0 0.0
  %1515 = vmatpush1.msra.mxu0 %v836
  %1516 = vmatprep.subr.mxu0 0.0
  %1517 = vmatpush1.msra.mxu0 %v831
  %1518 = vmatprep.subr.mxu0 0.0
  %1519 = vmatpush2.msra.mxu0 0.0
  %1520 = vmatprep.subr.mxu0 0.0
  %1521 = vmatpush2.msra.mxu0 0.0
  %1522 = vmatprep.subr.mxu0 0.0
  %1523 = vmatpush2.msra.mxu0 0.0
  %1524 = vmatprep.subr.mxu0 0.0
  %1525 = vmatpush2.msra.mxu0 0.0
  %1526 = vmatprep.subr.mxu0 0.0
  %1527 = vmatpush2.msra.mxu0 0.0
  %1528 = vmatprep.subr.mxu0 0.0
  %1529 = vmatpush2.msra.mxu0 0.0
  %1530 = vmatprep.subr.mxu0 0.0
  %1531 = vmatpush2.msra.mxu0 0.0
  %1532 = vmatprep.subr.mxu0 0.0
  %1533 = vmatpush2.msra.mxu0 0.0
  %1534 = vmatprep.subr.mxu0 0.0
  %1535 = vmatpush2.msra.mxu0 0.0
  %1536 = vmatprep.subr.mxu0 0.0
  %1537 = vmatpush2.msra.mxu0 0.0
  %1538 = vmatprep.subr.mxu0 0.0
  %1539 = vmatpush2.msra.mxu0 0.0
  %1540 = vmatprep.subr.mxu0 0.0
  %1541 = vmatpush2.msra.mxu0 0.0
  %1542 = vmatprep.subr.mxu0 0.0
  %1543 = vmatpush2.msra.mxu0 0.0
  %1544 = vmatprep.subr.mxu0 0.0
  %1545 = vmatpush2.msra.mxu0 0.0
  %1546 = vmatprep.subr.mxu0 0.0
  %1547 = vmatpush2.msra.mxu0 0.0
  %1548 = vmatprep.subr.mxu0 0.0
  %1549 = vmatpush2.msra.mxu0 0.0
  %1550 = vmatprep.mubr.f32.mxu0 0.0
  %1551 = vmatmul.mubr.f32.gmra.mxu0 %v1327
  %v1552 = vpop.f32.mrf.mxu0
  %v1553 = vadd.f32 0.0, %v1552
  %v1554 = vpop.f32.mrf.mxu0
  %1555 = vmatprep.mubr.f32.mxu0 0.0
  %1556 = vmatmul.mubr.f32.gmra.mxu0 %v1330
  %v1557 = vpop.f32.mrf.mxu0
  %v1558 = vadd.f32 0.0, %v1557
  %v1559 = vpop.f32.mrf.mxu0
  %1560 = vdwg.mxu0
  %v1561 = vadd.f32 %v29, %v769
  %v1562 = vadd.f32 %v30, %v770
  %v1563 = vadd.f32 %v31, %v771
  %v1564 = vadd.f32 %v32, %v772
  %v1565 = vadd.f32 %v33, %v773
  %v1566 = vadd.f32 %v34, %v774
  %v1567 = vadd.f32 %v35, %v775
  %v1568 = vadd.f32 %v36, %v776
  %v1569 = vadd.f32 %v37, %v777
  %v1570 = vadd.f32 %v38, %v778
  %v1571 = vadd.f32 %v1561, %v1399
  %v1572 = vadd.f32 %v1562, %v1401
  %v1573 = vadd.f32 %v1563, %v1476
  %v1574 = vadd.f32 %v1564, %v1478
  %v1575 = vadd.f32 %v1565, %v1553
  %v1576 = vadd.f32 %v1566, %v1405
  %v1577 = vadd.f32 %v1567, %v1407
  %v1578 = vadd.f32 %v1568, %v1482
  %v1579 = vadd.f32 %v1569, %v1484
  %v1580 = vadd.f32 %v1570, %v1558
  %v1581 = vmax.f32 %v1571, 0.0
  %v1582 = vmax.f32 %v1572, 0.0
  %v1583 = vmax.f32 %v1573, 0.0
  %v1584 = vmax.f32 %v1574, 0.0
  %v1585 = vmax.f32 %v1575, 0.0
  %v1586 = vmax.f32 %v1576, 0.0
  %v1587 = vmax.f32 %v1577, 0.0
  %v1588 = vmax.f32 %v1578, 0.0
  %v1589 = vmax.f32 %v1579, 0.0
  %v1590 = vmax.f32 %v1580, 0.0
  %1591 = vst [vmem:[%s8] sm:$0xff] %v1581
  %1592 = vst [vmem:[%s8 + $0x8] sm:$0xff] %v1582
  %1593 = vst [vmem:[%s8 + $0x10] sm:$0xff] %v1583
  %1594 = vst [vmem:[%s8 + $0x18] sm:$0xff] %v1584
  %1595 = vst [vmem:[%s8 + $0x20] sm:$0xff] %v1585
  %1596 = vst [vmem:[%s8 + $0x28] sm:$0xff] %v1586
  %1597 = vst [vmem:[%s8 + $0x30] sm:$0xff] %v1587
  %1598 = vst [vmem:[%s8 + $0x38] sm:$0xff] %v1588
  %1599 = vst [vmem:[%s8 + $0x40] sm:$0xff] %v1589
  %1600 = vst [vmem:[%s8 + $0x48] sm:$0xff] %v1590
  // Predicated region
  $region34: #{broadcasted_block.1} parent=0 // pred_check
    _
  $region35: #{broadcasted_block.1} parent=0 // pred_check_branch
    %1602 = sbr.rel (0) target = $region37
  $region36: #{broadcasted_block.1} parent=0 // pred_region
    _
  $region37: #{broadcasted_block.1} parent=0 // pred_fallthru
    _
  // Predicated region
  $region38: #{broadcasted_block.1} parent=0 // pred_check
    _
  $region39: #{broadcasted_block.1} parent=0 // pred_check_branch
    %1604 = sbr.rel (0) target = $region41
  $region40: #{broadcasted_block.1} parent=0 // pred_region
    _
  $region41: #{broadcasted_block.1} parent=0 // pred_fallthru
    _

</llo_original>
